<compile_context>
chip_gen: v7x
topology: tpu7x:2x2x1
jax: 0.10.0
libtpu: 0.0.40
codegen_flags: <defaults>
</compile_context>

<pallas_src>
import jax
import jax.numpy as jnp
from jax.experimental import pallas as pl
from jax.experimental.pallas import tpu as pltpu

LN_EPS = 1e-5


def mlp_kernel(x_ref,
               w1_ref, b1_ref, g1_ref, be1_ref,
               w2_ref, b2_ref, g2_ref, be2_ref,
               w3_ref, b3_ref, g3_ref, be3_ref,
               o_ref):
    """One row-tile of: 3x (Linear -> LayerNorm [-> ReLU])."""

    def block(h, w_ref, b_ref, g_ref, be_ref, relu):
        # MXU matmul: bf16 inputs, f32 accumulation.
        y = jnp.dot(h.astype(jnp.bfloat16), w_ref[...],
                    preferred_element_type=jnp.float32)
        y = y + b_ref[...]
        # Single-pass LayerNorm: sum and sum-of-squares from one read of y.
        inv_d = jnp.float32(1.0 / y.shape[-1])
        s = jnp.sum(y, axis=-1, keepdims=True)
        ss = jnp.sum(y * y, axis=-1, keepdims=True)
        mean = s * inv_d
        var = jnp.maximum(ss * inv_d - mean * mean, 0.0)
        y = (y - mean) * jax.lax.rsqrt(var + LN_EPS)
        y = y * g_ref[...] + be_ref[...]
        if relu:
            y = jnp.maximum(y, 0.0)
        return y

    h = x_ref[...].astype(jnp.float32)
    h = block(h, w1_ref, b1_ref, g1_ref, be1_ref, relu=True)
    h = block(h, w2_ref, b2_ref, g2_ref, be2_ref, relu=True)
    h = block(h, w3_ref, b3_ref, g3_ref, be3_ref, relu=False)
    o_ref[...] = h.astype(o_ref.dtype)


def _choose_row_tile(n_rows, tm_max):
    """Row tile that is a multiple of 128 (MXU/lane friendly), capped at
    tm_max, and small enough that the parallel grid axis keeps >=2 steps so
    both v7x TensorCores get work."""
    if n_rows <= 128:
        return n_rows                        # single full-array block (always legal)
    n_chunks = n_rows // 128                 # full 128-row chunks available
    tm = 128 * max(1, min(tm_max // 128, n_chunks // 2))
    return tm


def mlp_forward(x, params, *, tm=256):
    N, in_dim = x.shape
    out_dim = params["w1"].shape[1]
    tm = _choose_row_tile(N, tm)

    # Grid-invariant operands (weights / biases / LN affine): their index_map
    # never changes, so a single VMEM buffer suffices (no double buffering).
    def const_spec(shape):
        return pl.BlockSpec(shape, lambda i: (0, 0),
                            pipeline_mode=pl.Buffered(1))

    row_in = pl.BlockSpec((tm, in_dim), lambda i: (i, 0))
    row_out = pl.BlockSpec((tm, out_dim), lambda i: (i, 0))

    in_specs = [
        row_in,
        const_spec((in_dim, out_dim)), const_spec((1, out_dim)),
        const_spec((1, out_dim)), const_spec((1, out_dim)),
        const_spec((out_dim, out_dim)), const_spec((1, out_dim)),
        const_spec((1, out_dim)), const_spec((1, out_dim)),
        const_spec((out_dim, out_dim)), const_spec((1, out_dim)),
        const_spec((1, out_dim)), const_spec((1, out_dim)),
    ]

    # Explicit VMEM budget: bf16 weights single-buffered + f32 row tiles
    # double-buffered, 2x headroom + 8 MiB slack, capped at v7x's 64 MiB.
    w_bytes = 2 * (in_dim * out_dim + 2 * out_dim * out_dim)   # bf16 weights
    p_bytes = 4 * 9 * out_dim                                  # biases + LN affine (f32)
    act_bytes = 2 * 4 * tm * (in_dim + out_dim)                # in/out tiles, 2 bufs each
    est = w_bytes + p_bytes + act_bytes
    vmem_limit = int(min(64 << 20, max(32 << 20, 2 * est + (8 << 20))))

    return pl.pallas_call(
        mlp_kernel,
        out_shape=jax.ShapeDtypeStruct((N, out_dim), x.dtype),
        grid_spec=pltpu.PrefetchScalarGridSpec(
            num_scalar_prefetch=0,
            grid=(pl.cdiv(N, tm),),
            in_specs=in_specs,
            out_specs=row_out,
        ),
        compiler_params=pltpu.CompilerParams(
            dimension_semantics=("parallel",),
            vmem_limit_bytes=vmem_limit),
    )(
        x,
        params["w1"], params["b1"], params["g1"], params["be1"],
        params["w2"], params["b2"], params["g2"], params["be2"],
        params["w3"], params["b3"], params["g3"], params["be3"],
    )


def init_params(key, in_dim, out_dim, *, w_dtype=jnp.bfloat16, p_dtype=jnp.float32):
    """Mirror init_weights: Linear -> xavier_uniform weight (stored bf16 for
    the MXU), zero bias; LayerNorm -> ones weight, zero bias (kept f32)."""
    k1, k2, k3 = jax.random.split(key, 3)

    def xavier(k, fan_in, fan_out):
        bound = (6.0 / (fan_in + fan_out)) ** 0.5
        w = jax.random.uniform(k, (fan_in, fan_out), jnp.float32,
                               minval=-bound, maxval=bound)
        return w.astype(w_dtype)

    zeros = jnp.zeros((1, out_dim), p_dtype)
    ones = jnp.ones((1, out_dim), p_dtype)
    return {
        "w1": xavier(k1, in_dim, out_dim), "b1": zeros, "g1": ones, "be1": zeros,
        "w2": xavier(k2, out_dim, out_dim), "b2": zeros, "g2": ones, "be2": zeros,
        "w3": xavier(k3, out_dim, out_dim), "b3": zeros, "g3": ones, "be3": zeros,
    }


def mlp_reference(x, p):
    """Pure-JAX reference.  Same Linear+LN+ReLU structure as the torch module;
    matmul inputs are bf16-rounded (f32 accumulate) to mirror the kernel's
    bf16-MXU policy so a tight tolerance remains meaningful."""
    def ln(y, g, b):
        m = jnp.mean(y, axis=-1, keepdims=True)
        v = jnp.mean((y - m) ** 2, axis=-1, keepdims=True)
        return (y - m) * jax.lax.rsqrt(v + LN_EPS) * g + b

    def lin(h, w, b):
        return jnp.dot(h.astype(jnp.bfloat16).astype(jnp.float32),
                       w.astype(jnp.float32),
                       preferred_element_type=jnp.float32) + b

    h = x.astype(jnp.float32)
    h = jnp.maximum(ln(lin(h, p["w1"], p["b1"]), p["g1"], p["be1"]), 0.0)
    h = jnp.maximum(ln(lin(h, p["w2"], p["b2"]), p["g2"], p["be2"]), 0.0)
    h = ln(lin(h, p["w3"], p["b3"]), p["g3"], p["be3"])
    return h


if __name__ == "__main__":
    key = jax.random.PRNGKey(0)
    kx, kp = jax.random.split(key)

    # Small but lane-aligned demo shapes (feature dims multiples of 128).
    N, in_dim, out_dim = 256, 128, 128
    x = jax.random.normal(kx, (N, in_dim), jnp.float32)
    params = init_params(kp, in_dim, out_dim)

    out = mlp_forward(x, params, tm=256)
    out = jax.block_until_ready(out)

    ref = mlp_reference(x, params)
    assert out.shape == (N, out_dim)
    assert jnp.allclose(out, ref, atol=2e-3, rtol=2e-3), "mismatch vs reference"

    print("KERNEL_OK")
</pallas_src>

<mosaic_0001>
module attributes {stable_mosaic.version = 11 : i64} {
  func.func @mlp_kernel(%arg0: i32, %arg1: memref<128x128xf32, #tpu.memory_space<vmem>>, %arg2: memref<128x128xbf16, #tpu.memory_space<vmem>>, %arg3: memref<1x128xf32, #tpu.memory_space<vmem>>, %arg4: memref<1x128xf32, #tpu.memory_space<vmem>>, %arg5: memref<1x128xf32, #tpu.memory_space<vmem>>, %arg6: memref<128x128xbf16, #tpu.memory_space<vmem>>, %arg7: memref<1x128xf32, #tpu.memory_space<vmem>>, %arg8: memref<1x128xf32, #tpu.memory_space<vmem>>, %arg9: memref<1x128xf32, #tpu.memory_space<vmem>>, %arg10: memref<128x128xbf16, #tpu.memory_space<vmem>>, %arg11: memref<1x128xf32, #tpu.memory_space<vmem>>, %arg12: memref<1x128xf32, #tpu.memory_space<vmem>>, %arg13: memref<1x128xf32, #tpu.memory_space<vmem>>, %arg14: memref<128x128xf32, #tpu.memory_space<vmem>>) attributes {dimension_semantics = [#tpu.dimension_semantics<parallel>], iteration_bounds = array<i64: 2>, scalar_prefetch = 0 : i64, scratch_operands = 0 : i64, tpu.core_type = #tpu.core_type<tc>, window_params = [{transform_indices = @transform_0, window_bounds = array<i64: 128, 128>}, {pipeline_mode = #tpu.pipeline_mode<synchronous>, transform_indices = @transform_1, window_bounds = array<i64: 128, 128>}, {pipeline_mode = #tpu.pipeline_mode<synchronous>, transform_indices = @transform_2, window_bounds = array<i64: 1, 128>}, {pipeline_mode = #tpu.pipeline_mode<synchronous>, transform_indices = @transform_3, window_bounds = array<i64: 1, 128>}, {pipeline_mode = #tpu.pipeline_mode<synchronous>, transform_indices = @transform_4, window_bounds = array<i64: 1, 128>}, {pipeline_mode = #tpu.pipeline_mode<synchronous>, transform_indices = @transform_5, window_bounds = array<i64: 128, 128>}, {pipeline_mode = #tpu.pipeline_mode<synchronous>, transform_indices = @transform_6, window_bounds = array<i64: 1, 128>}, {pipeline_mode = #tpu.pipeline_mode<synchronous>, transform_indices = @transform_7, window_bounds = array<i64: 1, 128>}, {pipeline_mode = #tpu.pipeline_mode<synchronous>, transform_indices = @transform_8, window_bounds = array<i64: 1, 128>}, {pipeline_mode = #tpu.pipeline_mode<synchronous>, transform_indices = @transform_9, window_bounds = array<i64: 128, 128>}, {pipeline_mode = #tpu.pipeline_mode<synchronous>, transform_indices = @transform_10, window_bounds = array<i64: 1, 128>}, {pipeline_mode = #tpu.pipeline_mode<synchronous>, transform_indices = @transform_11, window_bounds = array<i64: 1, 128>}, {pipeline_mode = #tpu.pipeline_mode<synchronous>, transform_indices = @transform_12, window_bounds = array<i64: 1, 128>}, {transform_indices = @transform_13, window_bounds = array<i64: 128, 128>}]} {
    %c0 = arith.constant 0 : index
    %c0_0 = arith.constant 0 : index
    %0 = vector.load %arg1[%c0, %c0_0] : memref<128x128xf32, #tpu.memory_space<vmem>>, vector<128x128xf32>
    %1 = arith.truncf %0 : vector<128x128xf32> to vector<128x128xbf16>
    %c0_1 = arith.constant 0 : index
    %c0_2 = arith.constant 0 : index
    %2 = vector.load %arg2[%c0_1, %c0_2] : memref<128x128xbf16, #tpu.memory_space<vmem>>, vector<128x128xbf16>
    %cst = arith.constant dense<0.000000e+00> : vector<128x128xf32>
    %3 = tpu.matmul %1, %2, %cst {dimension_numbers = #tpu.dot_dimension_numbers<[1], [0], [0], [1], [0, 0, 1, 1], [], []>} : vector<128x128xbf16>, vector<128x128xbf16>, vector<128x128xf32> -> vector<128x128xf32>
    %c0_3 = arith.constant 0 : index
    %c0_4 = arith.constant 0 : index
    %4 = vector.load %arg3[%c0_3, %c0_4] : memref<1x128xf32, #tpu.memory_space<vmem>>, vector<1x128xf32>
    %5 = vector.broadcast %4 : vector<1x128xf32> to vector<128x128xf32>
    %6 = arith.addf %3, %5 : vector<128x128xf32>
    %cst_5 = arith.constant dense<0.000000e+00> : vector<128xf32>
    %7 = vector.multi_reduction <add>, %6, %cst_5 [1] : vector<128x128xf32> to vector<128xf32>
    %8 = vector.shape_cast %7 : vector<128xf32> to vector<128x1xf32>
    %9 = arith.mulf %6, %6 : vector<128x128xf32>
    %cst_6 = arith.constant dense<0.000000e+00> : vector<128xf32>
    %10 = vector.multi_reduction <add>, %9, %cst_6 [1] : vector<128x128xf32> to vector<128xf32>
    %11 = vector.shape_cast %10 : vector<128xf32> to vector<128x1xf32>
    %cst_7 = arith.constant 7.812500e-03 : f32
    %12 = vector.broadcast %cst_7 : f32 to vector<128x1xf32>
    %13 = arith.mulf %8, %12 : vector<128x1xf32>
    %cst_8 = arith.constant 7.812500e-03 : f32
    %14 = vector.broadcast %cst_8 : f32 to vector<128x1xf32>
    %15 = arith.mulf %11, %14 : vector<128x1xf32>
    %16 = arith.mulf %13, %13 : vector<128x1xf32>
    %17 = arith.subf %15, %16 : vector<128x1xf32>
    %cst_9 = arith.constant 0.000000e+00 : f32
    %18 = vector.broadcast %cst_9 : f32 to vector<128x1xf32>
    %19 = arith.maximumf %17, %18 : vector<128x1xf32>
    %20 = vector.broadcast %13 : vector<128x1xf32> to vector<128x128xf32>
    %21 = arith.subf %6, %20 : vector<128x128xf32>
    %cst_10 = arith.constant 9.99999974E-6 : f32
    %22 = vector.broadcast %cst_10 : f32 to vector<128x1xf32>
    %23 = arith.addf %19, %22 : vector<128x1xf32>
    %24 = math.rsqrt %23 : vector<128x1xf32>
    %25 = vector.broadcast %24 : vector<128x1xf32> to vector<128x128xf32>
    %26 = arith.mulf %21, %25 : vector<128x128xf32>
    %c0_11 = arith.constant 0 : index
    %c0_12 = arith.constant 0 : index
    %27 = vector.load %arg4[%c0_11, %c0_12] : memref<1x128xf32, #tpu.memory_space<vmem>>, vector<1x128xf32>
    %28 = vector.broadcast %27 : vector<1x128xf32> to vector<128x128xf32>
    %29 = arith.mulf %26, %28 : vector<128x128xf32>
    %c0_13 = arith.constant 0 : index
    %c0_14 = arith.constant 0 : index
    %30 = vector.load %arg5[%c0_13, %c0_14] : memref<1x128xf32, #tpu.memory_space<vmem>>, vector<1x128xf32>
    %31 = vector.broadcast %30 : vector<1x128xf32> to vector<128x128xf32>
    %32 = arith.addf %29, %31 : vector<128x128xf32>
    %cst_15 = arith.constant 0.000000e+00 : f32
    %33 = vector.broadcast %cst_15 : f32 to vector<128x128xf32>
    %34 = arith.maximumf %32, %33 : vector<128x128xf32>
    %35 = arith.truncf %34 : vector<128x128xf32> to vector<128x128xbf16>
    %c0_16 = arith.constant 0 : index
    %c0_17 = arith.constant 0 : index
    %36 = vector.load %arg6[%c0_16, %c0_17] : memref<128x128xbf16, #tpu.memory_space<vmem>>, vector<128x128xbf16>
    %cst_18 = arith.constant dense<0.000000e+00> : vector<128x128xf32>
    %37 = tpu.matmul %35, %36, %cst_18 {dimension_numbers = #tpu.dot_dimension_numbers<[1], [0], [0], [1], [0, 0, 1, 1], [], []>} : vector<128x128xbf16>, vector<128x128xbf16>, vector<128x128xf32> -> vector<128x128xf32>
    %c0_19 = arith.constant 0 : index
    %c0_20 = arith.constant 0 : index
    %38 = vector.load %arg7[%c0_19, %c0_20] : memref<1x128xf32, #tpu.memory_space<vmem>>, vector<1x128xf32>
    %39 = vector.broadcast %38 : vector<1x128xf32> to vector<128x128xf32>
    %40 = arith.addf %37, %39 : vector<128x128xf32>
    %cst_21 = arith.constant dense<0.000000e+00> : vector<128xf32>
    %41 = vector.multi_reduction <add>, %40, %cst_21 [1] : vector<128x128xf32> to vector<128xf32>
    %42 = vector.shape_cast %41 : vector<128xf32> to vector<128x1xf32>
    %43 = arith.mulf %40, %40 : vector<128x128xf32>
    %cst_22 = arith.constant dense<0.000000e+00> : vector<128xf32>
    %44 = vector.multi_reduction <add>, %43, %cst_22 [1] : vector<128x128xf32> to vector<128xf32>
    %45 = vector.shape_cast %44 : vector<128xf32> to vector<128x1xf32>
    %cst_23 = arith.constant 7.812500e-03 : f32
    %46 = vector.broadcast %cst_23 : f32 to vector<128x1xf32>
    %47 = arith.mulf %42, %46 : vector<128x1xf32>
    %cst_24 = arith.constant 7.812500e-03 : f32
    %48 = vector.broadcast %cst_24 : f32 to vector<128x1xf32>
    %49 = arith.mulf %45, %48 : vector<128x1xf32>
    %50 = arith.mulf %47, %47 : vector<128x1xf32>
    %51 = arith.subf %49, %50 : vector<128x1xf32>
    %cst_25 = arith.constant 0.000000e+00 : f32
    %52 = vector.broadcast %cst_25 : f32 to vector<128x1xf32>
    %53 = arith.maximumf %51, %52 : vector<128x1xf32>
    %54 = vector.broadcast %47 : vector<128x1xf32> to vector<128x128xf32>
    %55 = arith.subf %40, %54 : vector<128x128xf32>
    %cst_26 = arith.constant 9.99999974E-6 : f32
    %56 = vector.broadcast %cst_26 : f32 to vector<128x1xf32>
    %57 = arith.addf %53, %56 : vector<128x1xf32>
    %58 = math.rsqrt %57 : vector<128x1xf32>
    %59 = vector.broadcast %58 : vector<128x1xf32> to vector<128x128xf32>
    %60 = arith.mulf %55, %59 : vector<128x128xf32>
    %c0_27 = arith.constant 0 : index
    %c0_28 = arith.constant 0 : index
    %61 = vector.load %arg8[%c0_27, %c0_28] : memref<1x128xf32, #tpu.memory_space<vmem>>, vector<1x128xf32>
    %62 = vector.broadcast %61 : vector<1x128xf32> to vector<128x128xf32>
    %63 = arith.mulf %60, %62 : vector<128x128xf32>
    %c0_29 = arith.constant 0 : index
    %c0_30 = arith.constant 0 : index
    %64 = vector.load %arg9[%c0_29, %c0_30] : memref<1x128xf32, #tpu.memory_space<vmem>>, vector<1x128xf32>
    %65 = vector.broadcast %64 : vector<1x128xf32> to vector<128x128xf32>
    %66 = arith.addf %63, %65 : vector<128x128xf32>
    %cst_31 = arith.constant 0.000000e+00 : f32
    %67 = vector.broadcast %cst_31 : f32 to vector<128x128xf32>
    %68 = arith.maximumf %66, %67 : vector<128x128xf32>
    %69 = arith.truncf %68 : vector<128x128xf32> to vector<128x128xbf16>
    %c0_32 = arith.constant 0 : index
    %c0_33 = arith.constant 0 : index
    %70 = vector.load %arg10[%c0_32, %c0_33] : memref<128x128xbf16, #tpu.memory_space<vmem>>, vector<128x128xbf16>
    %cst_34 = arith.constant dense<0.000000e+00> : vector<128x128xf32>
    %71 = tpu.matmul %69, %70, %cst_34 {dimension_numbers = #tpu.dot_dimension_numbers<[1], [0], [0], [1], [0, 0, 1, 1], [], []>} : vector<128x128xbf16>, vector<128x128xbf16>, vector<128x128xf32> -> vector<128x128xf32>
    %c0_35 = arith.constant 0 : index
    %c0_36 = arith.constant 0 : index
    %72 = vector.load %arg11[%c0_35, %c0_36] : memref<1x128xf32, #tpu.memory_space<vmem>>, vector<1x128xf32>
    %73 = vector.broadcast %72 : vector<1x128xf32> to vector<128x128xf32>
    %74 = arith.addf %71, %73 : vector<128x128xf32>
    %cst_37 = arith.constant dense<0.000000e+00> : vector<128xf32>
    %75 = vector.multi_reduction <add>, %74, %cst_37 [1] : vector<128x128xf32> to vector<128xf32>
    %76 = vector.shape_cast %75 : vector<128xf32> to vector<128x1xf32>
    %77 = arith.mulf %74, %74 : vector<128x128xf32>
    %cst_38 = arith.constant dense<0.000000e+00> : vector<128xf32>
    %78 = vector.multi_reduction <add>, %77, %cst_38 [1] : vector<128x128xf32> to vector<128xf32>
    %79 = vector.shape_cast %78 : vector<128xf32> to vector<128x1xf32>
    %cst_39 = arith.constant 7.812500e-03 : f32
    %80 = vector.broadcast %cst_39 : f32 to vector<128x1xf32>
    %81 = arith.mulf %76, %80 : vector<128x1xf32>
    %cst_40 = arith.constant 7.812500e-03 : f32
    %82 = vector.broadcast %cst_40 : f32 to vector<128x1xf32>
    %83 = arith.mulf %79, %82 : vector<128x1xf32>
    %84 = arith.mulf %81, %81 : vector<128x1xf32>
    %85 = arith.subf %83, %84 : vector<128x1xf32>
    %cst_41 = arith.constant 0.000000e+00 : f32
    %86 = vector.broadcast %cst_41 : f32 to vector<128x1xf32>
    %87 = arith.maximumf %85, %86 : vector<128x1xf32>
    %88 = vector.broadcast %81 : vector<128x1xf32> to vector<128x128xf32>
    %89 = arith.subf %74, %88 : vector<128x128xf32>
    %cst_42 = arith.constant 9.99999974E-6 : f32
    %90 = vector.broadcast %cst_42 : f32 to vector<128x1xf32>
    %91 = arith.addf %87, %90 : vector<128x1xf32>
    %92 = math.rsqrt %91 : vector<128x1xf32>
    %93 = vector.broadcast %92 : vector<128x1xf32> to vector<128x128xf32>
    %94 = arith.mulf %89, %93 : vector<128x128xf32>
    %c0_43 = arith.constant 0 : index
    %c0_44 = arith.constant 0 : index
    %95 = vector.load %arg12[%c0_43, %c0_44] : memref<1x128xf32, #tpu.memory_space<vmem>>, vector<1x128xf32>
    %96 = vector.broadcast %95 : vector<1x128xf32> to vector<128x128xf32>
    %97 = arith.mulf %94, %96 : vector<128x128xf32>
    %c0_45 = arith.constant 0 : index
    %c0_46 = arith.constant 0 : index
    %98 = vector.load %arg13[%c0_45, %c0_46] : memref<1x128xf32, #tpu.memory_space<vmem>>, vector<1x128xf32>
    %99 = vector.broadcast %98 : vector<1x128xf32> to vector<128x128xf32>
    %100 = arith.addf %97, %99 : vector<128x128xf32>
    %c0_47 = arith.constant 0 : index
    %c0_48 = arith.constant 0 : index
    %101 = vector.load %arg14[%c0_47, %c0_48] : memref<128x128xf32, #tpu.memory_space<vmem>>, vector<128x128xf32>
    tpu.vector_store %arg14[%c0_47, %c0_48], %100 {strides = array<i32>} : memref<128x128xf32, #tpu.memory_space<vmem>>, vector<128x128xf32>,
    return
  }
  func.func @transform_0(%arg0: i32) -> (i32, i32) {
    %c0_i32 = arith.constant 0 : i32
    %c0_i32_0 = arith.constant 0 : i32
    return %arg0, %c0_i32 : i32, i32
  }
  func.func @transform_1(%arg0: i32) -> (i32, i32) {
    %c0_i32 = arith.constant 0 : i32
    %c0_i32_0 = arith.constant 0 : i32
    %c0_i32_1 = arith.constant 0 : i32
    return %c0_i32, %c0_i32_0 : i32, i32
  }
  func.func @transform_2(%arg0: i32) -> (i32, i32) {
    %c0_i32 = arith.constant 0 : i32
    %c0_i32_0 = arith.constant 0 : i32
    %c0_i32_1 = arith.constant 0 : i32
    return %c0_i32, %c0_i32_0 : i32, i32
  }
  func.func @transform_3(%arg0: i32) -> (i32, i32) {
    %c0_i32 = arith.constant 0 : i32
    %c0_i32_0 = arith.constant 0 : i32
    %c0_i32_1 = arith.constant 0 : i32
    return %c0_i32, %c0_i32_0 : i32, i32
  }
  func.func @transform_4(%arg0: i32) -> (i32, i32) {
    %c0_i32 = arith.constant 0 : i32
    %c0_i32_0 = arith.constant 0 : i32
    %c0_i32_1 = arith.constant 0 : i32
    return %c0_i32, %c0_i32_0 : i32, i32
  }
  func.func @transform_5(%arg0: i32) -> (i32, i32) {
    %c0_i32 = arith.constant 0 : i32
    %c0_i32_0 = arith.constant 0 : i32
    %c0_i32_1 = arith.constant 0 : i32
    return %c0_i32, %c0_i32_0 : i32, i32
  }
  func.func @transform_6(%arg0: i32) -> (i32, i32) {
    %c0_i32 = arith.constant 0 : i32
    %c0_i32_0 = arith.constant 0 : i32
    %c0_i32_1 = arith.constant 0 : i32
    return %c0_i32, %c0_i32_0 : i32, i32
  }
  func.func @transform_7(%arg0: i32) -> (i32, i32) {
    %c0_i32 = arith.constant 0 : i32
    %c0_i32_0 = arith.constant 0 : i32
    %c0_i32_1 = arith.constant 0 : i32
    return %c0_i32, %c0_i32_0 : i32, i32
  }
  func.func @transform_8(%arg0: i32) -> (i32, i32) {
    %c0_i32 = arith.constant 0 : i32
    %c0_i32_0 = arith.constant 0 : i32
    %c0_i32_1 = arith.constant 0 : i32
    return %c0_i32, %c0_i32_0 : i32, i32
  }
  func.func @transform_9(%arg0: i32) -> (i32, i32) {
    %c0_i32 = arith.constant 0 : i32
    %c0_i32_0 = arith.constant 0 : i32
    %c0_i32_1 = arith.constant 0 : i32
    return %c0_i32, %c0_i32_0 : i32, i32
  }
  func.func @transform_10(%arg0: i32) -> (i32, i32) {
    %c0_i32 = arith.constant 0 : i32
    %c0_i32_0 = arith.constant 0 : i32
    %c0_i32_1 = arith.constant 0 : i32
    return %c0_i32, %c0_i32_0 : i32, i32
  }
  func.func @transform_11(%arg0: i32) -> (i32, i32) {
    %c0_i32 = arith.constant 0 : i32
    %c0_i32_0 = arith.constant 0 : i32
    %c0_i32_1 = arith.constant 0 : i32
    return %c0_i32, %c0_i32_0 : i32, i32
  }
  func.func @transform_12(%arg0: i32) -> (i32, i32) {
    %c0_i32 = arith.constant 0 : i32
    %c0_i32_0 = arith.constant 0 : i32
    %c0_i32_1 = arith.constant 0 : i32
    return %c0_i32, %c0_i32_0 : i32, i32
  }
  func.func @transform_13(%arg0: i32) -> (i32, i32) {
    %c0_i32 = arith.constant 0 : i32
    %c0_i32_0 = arith.constant 0 : i32
    return %arg0, %c0_i32 : i32, i32
  }
}

</mosaic_0001>

<llo_original>
// kernel: tpu_custom_call.1
$region0: #{tpu_custom_call.1}
  #allocation0 [shape = 'u32[]', space=smem, size = 0x4, offset = 0x4, fixed_abs, tag = 'smem constant byte address 0x4 - core index']
  #allocation1 [shape = 'u32[144,128]{1,0:T(1,128)}', space=vmem, size = 0x12000, scoped, tag = 'internal scratch']
  %s0 = inlined_call_operand.hbm [shape: f32[256,128], index: 0, kind: input, shape index: {}]
  %s1 = inlined_call_operand.hbm [shape: bf16[128,128], index: 1, kind: input, shape index: {}]
  %s2 = inlined_call_operand.vmem [shape: f32[1,128], index: 2, kind: input, shape index: {}]
  %s3 = inlined_call_operand.vmem [shape: f32[1,128], index: 3, kind: input, shape index: {}]
  %s4 = inlined_call_operand.vmem [shape: f32[1,128], index: 4, kind: input, shape index: {}]
  %s5 = inlined_call_operand.hbm [shape: bf16[128,128], index: 5, kind: input, shape index: {}]
  %s6 = inlined_call_operand.vmem [shape: f32[1,128], index: 6, kind: input, shape index: {}]
  %s7 = inlined_call_operand.vmem [shape: f32[1,128], index: 7, kind: input, shape index: {}]
  %s8 = inlined_call_operand.vmem [shape: f32[1,128], index: 8, kind: input, shape index: {}]
  %s9 = inlined_call_operand.hbm [shape: bf16[128,128], index: 9, kind: input, shape index: {}]
  %s10 = inlined_call_operand.vmem [shape: f32[1,128], index: 10, kind: input, shape index: {}]
  %s11 = inlined_call_operand.vmem [shape: f32[1,128], index: 11, kind: input, shape index: {}]
  %s12 = inlined_call_operand.vmem [shape: f32[1,128], index: 12, kind: input, shape index: {}]
  %s13 = inlined_call_operand.hbm [shape: f32[256,128], index: 13, kind: output, shape index: {}]
  %s14 = sld [smem:[#allocation0]]
  $region101: #{tpu_custom_call.1} parent=0
    _
  %s16 = ssub.s32 1, %s14
  %s17 = scalar_select 0, %s16, %s14
  $region1: #{tpu_custom_call.1} parent=0
    #allocation2 [shape = 'u8[131072]{0}', space=vmem, size = 0x20000, scoped, tag = 'input window, operand 0']
    #allocation3 [shape = 's32[2]{0}', space=sflag, size = 0x8, scoped, tag = 'scoped memory for tpu_custom_call.1']
    #allocation4 [shape = 's32[2]{0}', space=sflag, size = 0x8, scoped, tag = 'scoped memory for tpu_custom_call.1']
    #allocation5 [shape = 'u8[32768]{0}', space=vmem, size = 0x8000, scoped, tag = 'input window, operand 1, single buffered']
    #allocation6 [shape = 's32[1]{0}', space=sflag, size = 0x4, scoped, tag = 'scoped memory for tpu_custom_call.1']
    #allocation7 [shape = 'u8[32768]{0}', space=vmem, size = 0x8000, scoped, tag = 'input window, operand 5, single buffered']
    #allocation8 [shape = 'u8[32768]{0}', space=vmem, size = 0x8000, scoped, tag = 'input window, operand 9, single buffered']
    #allocation9 [shape = 's32[1]{0}', space=sflag, size = 0x4, scoped, tag = 'scoped memory for tpu_custom_call.1']
    #allocation10 [shape = 'u8[131072]{0}', space=vmem, size = 0x20000, scoped, tag = 'output window, operand 0']
    %18 = vsyncpa [#allocation3], 0
    %s19 = scalar_lea.sflag [#allocation3], 1
    %20 = vsyncpa %s19, 0
    %21 = vsyncpa [#allocation6], 0
    %22 = vsyncpa [#allocation9], 0
    %23 = vsyncpa [#allocation4], 0
    %s24 = scalar_lea.sflag [#allocation4], 1
    %25 = vsyncpa %s24, 0
    loop: start=0, step=1, limit=4
    $region2: #{tpu_custom_call.1} parent=1 // loop_pre_header
      _
    $region3: #{tpu_custom_call.1} parent=1 // loop_header
      %s27 = sphi 0, %s31
      %p28 = scmp.ge.s32.totalorder %s27, 4
      %s37 = sphi 0, %s39
      %s40 = sphi 0, %s37
      %s41 = sphi 0, %s40
      %s57 = sphi 0, %s41
      %s61 = sphi 0, %s61
      %s63 = sphi 0, %s61
      %s64 = sphi 0, %s63
      %s78 = sphi 0, %s64
      %s82 = sphi 0, %s82
      %s84 = sphi 0, %s82
      %s85 = sphi 0, %s84
      %s99 = sphi 0, %s85
      %s103 = sphi 0, %s103
      %s105 = sphi 0, %s103
      %s106 = sphi 0, %s105
      %s120 = sphi 0, %s106
      %s124 = sphi 0, %s124
      %s126 = sphi 0, %s124
      %s127 = sphi 0, %s126
      %s141 = sphi 0, %s127
      %s145 = sphi 0, %s145
      %s147 = sphi 0, %s145
      %s148 = sphi 0, %s147
      %s162 = sphi 0, %s148
      %s166 = sphi 0, %s166
      %s168 = sphi 0, %s166
      %s169 = sphi 0, %s168
      %s183 = sphi 0, %s169
      %s187 = sphi 0, %s187
      %s189 = sphi 0, %s187
      %s190 = sphi 0, %s189
      %s204 = sphi 0, %s190
      %s208 = sphi 0, %s208
      %s210 = sphi 0, %s208
      %s211 = sphi 0, %s210
      %s225 = sphi 0, %s211
      %s229 = sphi 0, %s229
      %s231 = sphi 0, %s229
      %s232 = sphi 0, %s231
      %s246 = sphi 0, %s232
      %s250 = sphi 0, %s250
      %s252 = sphi 0, %s250
      %s253 = sphi 0, %s252
      %s267 = sphi 0, %s253
      %s271 = sphi 0, %s271
      %s273 = sphi 0, %s271
      %s274 = sphi 0, %s273
      %s288 = sphi 0, %s274
      %s292 = sphi 0, %s292
      %s294 = sphi 0, %s292
      %s295 = sphi 0, %s294
      %s309 = sphi 0, %s295
      %s315 = sphi 0, %s317
      %s318 = sphi 0, %s315
      %s319 = sphi 0, %s318
      %s335 = sphi 0, %s319
    $region4: #{tpu_custom_call.1} parent=1 // loop_header_branch
      %30 = sbr.rel (%p28) target = $region8
    $region5: #{tpu_custom_call.1} parent=1 // loop_body
      %s32 = ssub.s32 %s27, 1
      %s33 = ssub.s32 %s27, 2
      %s34 = sadd.s32 %s27, 1
      %s35 = ssub.s32 %s27, %s34
      %p36 = scmp.eq.s32.totalorder %s35, 0
      %s38 = sadd.s32 %s37, 1
      %s39 = scalar_select %p36, %s37, %s38
      %p42 = pneg %p36
      %p43 = scmp.eq.s32.totalorder %s27, 1
      %p44 = por %p42, %p43
      %p45 = scmp.ne.s32.totalorder %s37, %s40
      %p46 = scmp.eq.s32.totalorder %s27, 0
      %p47 = por %p45, %p46
      %p48 = scmp.ne.s32.totalorder %s37, %s40
      %p49 = scmp.eq.s32.totalorder %s32, 1
      %p50 = por %p48, %p49
      %p51 = scmp.ne.s32.totalorder %s40, %s41
      %p52 = scmp.eq.s32.totalorder %s32, 0
      %p53 = por %p51, %p52
      %p54 = scmp.ne.s32.totalorder %s40, %s41
      %p55 = scmp.eq.s32.totalorder %s33, 1
      %p56 = por %p54, %p55
      %p58 = scmp.ne.s32.totalorder %s41, %s57
      %p59 = scmp.eq.s32.totalorder %s33, 0
      %p60 = por %p58, %p59
      %s62 = sadd.s32 %s61, 1
      %p65 = scmp.eq.s32.totalorder %s27, 1
      %p66 = scmp.ne.s32.totalorder %s61, %s63
      %p67 = scmp.eq.s32.totalorder %s27, 0
      %p68 = por %p66, %p67
      %p69 = scmp.ne.s32.totalorder %s61, %s63
      %p70 = scmp.eq.s32.totalorder %s32, 1
      %p71 = por %p69, %p70
      %p72 = scmp.ne.s32.totalorder %s63, %s64
      %p73 = scmp.eq.s32.totalorder %s32, 0
      %p74 = por %p72, %p73
      %p75 = scmp.ne.s32.totalorder %s63, %s64
      %p76 = scmp.eq.s32.totalorder %s33, 1
      %p77 = por %p75, %p76
      %p79 = scmp.ne.s32.totalorder %s64, %s78
      %p80 = scmp.eq.s32.totalorder %s33, 0
      %p81 = por %p79, %p80
      %s83 = sadd.s32 %s82, 1
      %p86 = scmp.eq.s32.totalorder %s27, 1
      %p87 = scmp.ne.s32.totalorder %s82, %s84
      %p88 = scmp.eq.s32.totalorder %s27, 0
      %p89 = por %p87, %p88
      %p90 = scmp.ne.s32.totalorder %s82, %s84
      %p91 = scmp.eq.s32.totalorder %s32, 1
      %p92 = por %p90, %p91
      %p93 = scmp.ne.s32.totalorder %s84, %s85
      %p94 = scmp.eq.s32.totalorder %s32, 0
      %p95 = por %p93, %p94
      %p96 = scmp.ne.s32.totalorder %s84, %s85
      %p97 = scmp.eq.s32.totalorder %s33, 1
      %p98 = por %p96, %p97
      %p100 = scmp.ne.s32.totalorder %s85, %s99
      %p101 = scmp.eq.s32.totalorder %s33, 0
      %p102 = por %p100, %p101
      %s104 = sadd.s32 %s103, 1
      %p107 = scmp.eq.s32.totalorder %s27, 1
      %p108 = scmp.ne.s32.totalorder %s103, %s105
      %p109 = scmp.eq.s32.totalorder %s27, 0
      %p110 = por %p108, %p109
      %p111 = scmp.ne.s32.totalorder %s103, %s105
      %p112 = scmp.eq.s32.totalorder %s32, 1
      %p113 = por %p111, %p112
      %p114 = scmp.ne.s32.totalorder %s105, %s106
      %p115 = scmp.eq.s32.totalorder %s32, 0
      %p116 = por %p114, %p115
      %p117 = scmp.ne.s32.totalorder %s105, %s106
      %p118 = scmp.eq.s32.totalorder %s33, 1
      %p119 = por %p117, %p118
      %p121 = scmp.ne.s32.totalorder %s106, %s120
      %p122 = scmp.eq.s32.totalorder %s33, 0
      %p123 = por %p121, %p122
      %s125 = sadd.s32 %s124, 1
      %p128 = scmp.eq.s32.totalorder %s27, 1
      %p129 = scmp.ne.s32.totalorder %s124, %s126
      %p130 = scmp.eq.s32.totalorder %s27, 0
      %p131 = por %p129, %p130
      %p132 = scmp.ne.s32.totalorder %s124, %s126
      %p133 = scmp.eq.s32.totalorder %s32, 1
      %p134 = por %p132, %p133
      %p135 = scmp.ne.s32.totalorder %s126, %s127
      %p136 = scmp.eq.s32.totalorder %s32, 0
      %p137 = por %p135, %p136
      %p138 = scmp.ne.s32.totalorder %s126, %s127
      %p139 = scmp.eq.s32.totalorder %s33, 1
      %p140 = por %p138, %p139
      %p142 = scmp.ne.s32.totalorder %s127, %s141
      %p143 = scmp.eq.s32.totalorder %s33, 0
      %p144 = por %p142, %p143
      %s146 = sadd.s32 %s145, 1
      %p149 = scmp.eq.s32.totalorder %s27, 1
      %p150 = scmp.ne.s32.totalorder %s145, %s147
      %p151 = scmp.eq.s32.totalorder %s27, 0
      %p152 = por %p150, %p151
      %p153 = scmp.ne.s32.totalorder %s145, %s147
      %p154 = scmp.eq.s32.totalorder %s32, 1
      %p155 = por %p153, %p154
      %p156 = scmp.ne.s32.totalorder %s147, %s148
      %p157 = scmp.eq.s32.totalorder %s32, 0
      %p158 = por %p156, %p157
      %p159 = scmp.ne.s32.totalorder %s147, %s148
      %p160 = scmp.eq.s32.totalorder %s33, 1
      %p161 = por %p159, %p160
      %p163 = scmp.ne.s32.totalorder %s148, %s162
      %p164 = scmp.eq.s32.totalorder %s33, 0
      %p165 = por %p163, %p164
      %s167 = sadd.s32 %s166, 1
      %p170 = scmp.eq.s32.totalorder %s27, 1
      %p171 = scmp.ne.s32.totalorder %s166, %s168
      %p172 = scmp.eq.s32.totalorder %s27, 0
      %p173 = por %p171, %p172
      %p174 = scmp.ne.s32.totalorder %s166, %s168
      %p175 = scmp.eq.s32.totalorder %s32, 1
      %p176 = por %p174, %p175
      %p177 = scmp.ne.s32.totalorder %s168, %s169
      %p178 = scmp.eq.s32.totalorder %s32, 0
      %p179 = por %p177, %p178
      %p180 = scmp.ne.s32.totalorder %s168, %s169
      %p181 = scmp.eq.s32.totalorder %s33, 1
      %p182 = por %p180, %p181
      %p184 = scmp.ne.s32.totalorder %s169, %s183
      %p185 = scmp.eq.s32.totalorder %s33, 0
      %p186 = por %p184, %p185
      %s188 = sadd.s32 %s187, 1
      %p191 = scmp.eq.s32.totalorder %s27, 1
      %p192 = scmp.ne.s32.totalorder %s187, %s189
      %p193 = scmp.eq.s32.totalorder %s27, 0
      %p194 = por %p192, %p193
      %p195 = scmp.ne.s32.totalorder %s187, %s189
      %p196 = scmp.eq.s32.totalorder %s32, 1
      %p197 = por %p195, %p196
      %p198 = scmp.ne.s32.totalorder %s189, %s190
      %p199 = scmp.eq.s32.totalorder %s32, 0
      %p200 = por %p198, %p199
      %p201 = scmp.ne.s32.totalorder %s189, %s190
      %p202 = scmp.eq.s32.totalorder %s33, 1
      %p203 = por %p201, %p202
      %p205 = scmp.ne.s32.totalorder %s190, %s204
      %p206 = scmp.eq.s32.totalorder %s33, 0
      %p207 = por %p205, %p206
      %s209 = sadd.s32 %s208, 1
      %p212 = scmp.eq.s32.totalorder %s27, 1
      %p213 = scmp.ne.s32.totalorder %s208, %s210
      %p214 = scmp.eq.s32.totalorder %s27, 0
      %p215 = por %p213, %p214
      %p216 = scmp.ne.s32.totalorder %s208, %s210
      %p217 = scmp.eq.s32.totalorder %s32, 1
      %p218 = por %p216, %p217
      %p219 = scmp.ne.s32.totalorder %s210, %s211
      %p220 = scmp.eq.s32.totalorder %s32, 0
      %p221 = por %p219, %p220
      %p222 = scmp.ne.s32.totalorder %s210, %s211
      %p223 = scmp.eq.s32.totalorder %s33, 1
      %p224 = por %p222, %p223
      %p226 = scmp.ne.s32.totalorder %s211, %s225
      %p227 = scmp.eq.s32.totalorder %s33, 0
      %p228 = por %p226, %p227
      %s230 = sadd.s32 %s229, 1
      %p233 = scmp.eq.s32.totalorder %s27, 1
      %p234 = scmp.ne.s32.totalorder %s229, %s231
      %p235 = scmp.eq.s32.totalorder %s27, 0
      %p236 = por %p234, %p235
      %p237 = scmp.ne.s32.totalorder %s229, %s231
      %p238 = scmp.eq.s32.totalorder %s32, 1
      %p239 = por %p237, %p238
      %p240 = scmp.ne.s32.totalorder %s231, %s232
      %p241 = scmp.eq.s32.totalorder %s32, 0
      %p242 = por %p240, %p241
      %p243 = scmp.ne.s32.totalorder %s231, %s232
      %p244 = scmp.eq.s32.totalorder %s33, 1
      %p245 = por %p243, %p244
      %p247 = scmp.ne.s32.totalorder %s232, %s246
      %p248 = scmp.eq.s32.totalorder %s33, 0
      %p249 = por %p247, %p248
      %s251 = sadd.s32 %s250, 1
      %p254 = scmp.eq.s32.totalorder %s27, 1
      %p255 = scmp.ne.s32.totalorder %s250, %s252
      %p256 = scmp.eq.s32.totalorder %s27, 0
      %p257 = por %p255, %p256
      %p258 = scmp.ne.s32.totalorder %s250, %s252
      %p259 = scmp.eq.s32.totalorder %s32, 1
      %p260 = por %p258, %p259
      %p261 = scmp.ne.s32.totalorder %s252, %s253
      %p262 = scmp.eq.s32.totalorder %s32, 0
      %p263 = por %p261, %p262
      %p264 = scmp.ne.s32.totalorder %s252, %s253
      %p265 = scmp.eq.s32.totalorder %s33, 1
      %p266 = por %p264, %p265
      %p268 = scmp.ne.s32.totalorder %s253, %s267
      %p269 = scmp.eq.s32.totalorder %s33, 0
      %p270 = por %p268, %p269
      %s272 = sadd.s32 %s271, 1
      %p275 = scmp.eq.s32.totalorder %s27, 1
      %p276 = scmp.ne.s32.totalorder %s271, %s273
      %p277 = scmp.eq.s32.totalorder %s27, 0
      %p278 = por %p276, %p277
      %p279 = scmp.ne.s32.totalorder %s271, %s273
      %p280 = scmp.eq.s32.totalorder %s32, 1
      %p281 = por %p279, %p280
      %p282 = scmp.ne.s32.totalorder %s273, %s274
      %p283 = scmp.eq.s32.totalorder %s32, 0
      %p284 = por %p282, %p283
      %p285 = scmp.ne.s32.totalorder %s273, %s274
      %p286 = scmp.eq.s32.totalorder %s33, 1
      %p287 = por %p285, %p286
      %p289 = scmp.ne.s32.totalorder %s274, %s288
      %p290 = scmp.eq.s32.totalorder %s33, 0
      %p291 = por %p289, %p290
      %s293 = sadd.s32 %s292, 1
      %p296 = scmp.eq.s32.totalorder %s27, 1
      %p297 = scmp.ne.s32.totalorder %s292, %s294
      %p298 = scmp.eq.s32.totalorder %s27, 0
      %p299 = por %p297, %p298
      %p300 = scmp.ne.s32.totalorder %s292, %s294
      %p301 = scmp.eq.s32.totalorder %s32, 1
      %p302 = por %p300, %p301
      %p303 = scmp.ne.s32.totalorder %s294, %s295
      %p304 = scmp.eq.s32.totalorder %s32, 0
      %p305 = por %p303, %p304
      %p306 = scmp.ne.s32.totalorder %s294, %s295
      %p307 = scmp.eq.s32.totalorder %s33, 1
      %p308 = por %p306, %p307
      %p310 = scmp.ne.s32.totalorder %s295, %s309
      %p311 = scmp.eq.s32.totalorder %s33, 0
      %p312 = por %p310, %p311
      %s313 = ssub.s32 %s27, %s34
      %p314 = scmp.eq.s32.totalorder %s313, 0
      %s316 = sadd.s32 %s315, 1
      %s317 = scalar_select %p314, %s315, %s316
      %p320 = pneg %p314
      %p321 = scmp.eq.s32.totalorder %s27, 1
      %p322 = por %p320, %p321
      %p323 = scmp.ne.s32.totalorder %s315, %s318
      %p324 = scmp.eq.s32.totalorder %s27, 0
      %p325 = por %p323, %p324
      %p326 = scmp.ne.s32.totalorder %s315, %s318
      %p327 = scmp.eq.s32.totalorder %s32, 1
      %p328 = por %p326, %p327
      %p329 = scmp.ne.s32.totalorder %s318, %s319
      %p330 = scmp.eq.s32.totalorder %s32, 0
      %p331 = por %p329, %p330
      %p332 = scmp.ne.s32.totalorder %s318, %s319
      %p333 = scmp.eq.s32.totalorder %s33, 1
      %p334 = por %p332, %p333
      %p336 = scmp.ne.s32.totalorder %s319, %s335
      %p337 = scmp.eq.s32.totalorder %s33, 0
      %p338 = por %p336, %p337
      %p339 = scmp.le.s32.totalorder 1, %s27
      %p340 = scmp.lt.s32.totalorder %s27, 3
      %p341 = pnand %p339, %p340
      %p342 = pneg %p341
      // Predicated region
      $region9: #{tpu_custom_call.1} parent=5 // pred_check
        _
      $region10: #{tpu_custom_call.1} parent=5 // pred_check_branch
        %344 = sbr.rel (%p341) target = $region12
      $region11: #{tpu_custom_call.1} parent=5 // pred_region
        %s345 = ssub.s32 %s27, 1
        // Predicated region
        $region13: #{tpu_custom_call.1} parent=11 // pred_check
          %p346 = pneg %p74
        $region14: #{tpu_custom_call.1} parent=11 // pred_check_branch
          %348 = sbr.rel (%p346) target = $region16
        $region15: #{tpu_custom_call.1} parent=11 // pred_region
          %s350 = ssub.s32 1024, 1024
          %351 = vsyncadd [#allocation6], %s350
          %s352 = sshll.u32 [#allocation5], 4
          %s353 = int_to_ptr.vmem [resolvable:$true] %s352
          %358 = dma.hbm_to_vmem [thread:$0]  %s1, 1024, %s353, [#allocation6], 64, 64, 4
        $region16: #{tpu_custom_call.1} parent=11 // pred_fallthru
          _
        // Predicated region
        $region17: #{tpu_custom_call.1} parent=11 // pred_check
          %p359 = pneg %p95
        $region18: #{tpu_custom_call.1} parent=11 // pred_check_branch
          %361 = sbr.rel (%p359) target = $region20
        $region19: #{tpu_custom_call.1} parent=11 // pred_region
          _
        $region20: #{tpu_custom_call.1} parent=11 // pred_fallthru
          _
        // Predicated region
        $region21: #{tpu_custom_call.1} parent=11 // pred_check
          %p362 = pneg %p116
        $region22: #{tpu_custom_call.1} parent=11 // pred_check_branch
          %364 = sbr.rel (%p362) target = $region24
        $region23: #{tpu_custom_call.1} parent=11 // pred_region
          _
        $region24: #{tpu_custom_call.1} parent=11 // pred_fallthru
          _
        // Predicated region
        $region25: #{tpu_custom_call.1} parent=11 // pred_check
          %p365 = pneg %p137
        $region26: #{tpu_custom_call.1} parent=11 // pred_check_branch
          %367 = sbr.rel (%p365) target = $region28
        $region27: #{tpu_custom_call.1} parent=11 // pred_region
          _
        $region28: #{tpu_custom_call.1} parent=11 // pred_fallthru
          _
        // Predicated region
        $region29: #{tpu_custom_call.1} parent=11 // pred_check
          %p368 = pneg %p158
        $region30: #{tpu_custom_call.1} parent=11 // pred_check_branch
          %370 = sbr.rel (%p368) target = $region32
        $region31: #{tpu_custom_call.1} parent=11 // pred_region
          %s372 = ssub.s32 1024, 1024
          %373 = vsyncadd [#allocation6], %s372
          %s374 = sshll.u32 [#allocation7], 4
          %s375 = int_to_ptr.vmem [resolvable:$true] %s374
          %380 = dma.hbm_to_vmem [thread:$0]  %s5, 1024, %s375, [#allocation6], 64, 64, 4
        $region32: #{tpu_custom_call.1} parent=11 // pred_fallthru
          _
        // Predicated region
        $region33: #{tpu_custom_call.1} parent=11 // pred_check
          %p381 = pneg %p179
        $region34: #{tpu_custom_call.1} parent=11 // pred_check_branch
          %383 = sbr.rel (%p381) target = $region36
        $region35: #{tpu_custom_call.1} parent=11 // pred_region
          _
        $region36: #{tpu_custom_call.1} parent=11 // pred_fallthru
          _
        // Predicated region
        $region37: #{tpu_custom_call.1} parent=11 // pred_check
          %p384 = pneg %p200
        $region38: #{tpu_custom_call.1} parent=11 // pred_check_branch
          %386 = sbr.rel (%p384) target = $region40
        $region39: #{tpu_custom_call.1} parent=11 // pred_region
          _
        $region40: #{tpu_custom_call.1} parent=11 // pred_fallthru
          _
        // Predicated region
        $region41: #{tpu_custom_call.1} parent=11 // pred_check
          %p387 = pneg %p221
        $region42: #{tpu_custom_call.1} parent=11 // pred_check_branch
          %389 = sbr.rel (%p387) target = $region44
        $region43: #{tpu_custom_call.1} parent=11 // pred_region
          _
        $region44: #{tpu_custom_call.1} parent=11 // pred_fallthru
          _
        // Predicated region
        $region45: #{tpu_custom_call.1} parent=11 // pred_check
          %p390 = pneg %p242
        $region46: #{tpu_custom_call.1} parent=11 // pred_check_branch
          %392 = sbr.rel (%p390) target = $region48
        $region47: #{tpu_custom_call.1} parent=11 // pred_region
          %s394 = ssub.s32 1024, 1024
          %395 = vsyncadd [#allocation9], %s394
          %s396 = sshll.u32 [#allocation8], 4
          %s397 = int_to_ptr.vmem [resolvable:$true] %s396
          %402 = dma.hbm_to_vmem [thread:$0]  %s9, 1024, %s397, [#allocation9], 64, 64, 4
        $region48: #{tpu_custom_call.1} parent=11 // pred_fallthru
          _
        // Predicated region
        $region49: #{tpu_custom_call.1} parent=11 // pred_check
          %p403 = pneg %p263
        $region50: #{tpu_custom_call.1} parent=11 // pred_check_branch
          %405 = sbr.rel (%p403) target = $region52
        $region51: #{tpu_custom_call.1} parent=11 // pred_region
          _
        $region52: #{tpu_custom_call.1} parent=11 // pred_fallthru
          _
        // Predicated region
        $region53: #{tpu_custom_call.1} parent=11 // pred_check
          %p406 = pneg %p284
        $region54: #{tpu_custom_call.1} parent=11 // pred_check_branch
          %408 = sbr.rel (%p406) target = $region56
        $region55: #{tpu_custom_call.1} parent=11 // pred_region
          _
        $region56: #{tpu_custom_call.1} parent=11 // pred_fallthru
          _
        // Predicated region
        $region57: #{tpu_custom_call.1} parent=11 // pred_check
          %p409 = pneg %p305
        $region58: #{tpu_custom_call.1} parent=11 // pred_check_branch
          %411 = sbr.rel (%p409) target = $region60
        $region59: #{tpu_custom_call.1} parent=11 // pred_region
          _
        $region60: #{tpu_custom_call.1} parent=11 // pred_fallthru
          _
      $region12: #{tpu_custom_call.1} parent=5 // pred_fallthru
        _
      %p412 = scmp.lt.s32.totalorder %s27, 2
      // Predicated region
      $region61: #{tpu_custom_call.1} parent=5 // pred_check
        %p413 = pneg %p412
      $region62: #{tpu_custom_call.1} parent=5 // pred_check_branch
        %415 = sbr.rel (%p413) target = $region64
      $region63: #{tpu_custom_call.1} parent=5 // pred_region
        // Predicated region
        $region65: #{tpu_custom_call.1} parent=63 // pred_check
          %p416 = pneg %p47
        $region66: #{tpu_custom_call.1} parent=63 // pred_check_branch
          %418 = sbr.rel (%p416) target = $region68
        $region67: #{tpu_custom_call.1} parent=63 // pred_region
          %s419 = sand.u32 %s37, 1
          %s420 = scalar_lea.sflag [#allocation3], %s419
          %s421 = sand.u32 %s37, 1
          %s422 = smul.addr %s421, 128
          %s423 = scalar_lea.vmem [#allocation2], %s422
          %s424 = smul.u32 16, %s27
          %s426 = ssub.s32 2048, 2048
          %427 = vsyncadd %s420, %s426
          %s428 = smul.addr %s424, 128
          %s429 = scalar_lea.hbm %s0, %s428
          %s430 = sshll.u32 %s423, 4
          %s431 = int_to_ptr.vmem [resolvable:$true] %s430
          %436 = dma.hbm_to_vmem [thread:$0]  %s429, 2048, %s431, %s420, 128, 128, 8
        $region68: #{tpu_custom_call.1} parent=63 // pred_fallthru
          _
      $region64: #{tpu_custom_call.1} parent=5 // pred_fallthru
        _
      %p437 = scmp.le.s32.totalorder 1, %s27
      %p438 = scmp.lt.s32.totalorder %s27, 3
      %p439 = pnand %p437, %p438
      %p440 = pneg %p439
      // Predicated region
      $region69: #{tpu_custom_call.1} parent=5 // pred_check
        _
      $region70: #{tpu_custom_call.1} parent=5 // pred_check_branch
        %442 = sbr.rel (%p439) target = $region72
      $region71: #{tpu_custom_call.1} parent=5 // pred_region
        %s443 = ssub.s32 %s27, 1
        %s444 = sand.u32 %s40, 1
        %s445 = scalar_lea.sflag [#allocation3], %s444
        %s446 = sand.u32 %s40, 1
        %s447 = smul.addr %s446, 128
        %s448 = scalar_lea.vmem [#allocation2], %s447
        // Predicated region
        $region73: #{tpu_custom_call.1} parent=71 // pred_check
          %p449 = pneg %p53
        $region74: #{tpu_custom_call.1} parent=71 // pred_check_branch
          %451 = sbr.rel (%p449) target = $region76
        $region75: #{tpu_custom_call.1} parent=71 // pred_region
          %452 = dma.done %s445, 2048
        $region76: #{tpu_custom_call.1} parent=71 // pred_fallthru
          _
        // Predicated region
        $region77: #{tpu_custom_call.1} parent=71 // pred_check
          %p453 = pneg %p74
        $region78: #{tpu_custom_call.1} parent=71 // pred_check_branch
          %455 = sbr.rel (%p453) target = $region80
        $region79: #{tpu_custom_call.1} parent=71 // pred_region
          %456 = dma.done [#allocation6], 1024
        $region80: #{tpu_custom_call.1} parent=71 // pred_fallthru
          _
        // Predicated region
        $region81: #{tpu_custom_call.1} parent=71 // pred_check
          %p457 = pneg %p158
        $region82: #{tpu_custom_call.1} parent=71 // pred_check_branch
          %459 = sbr.rel (%p457) target = $region84
        $region83: #{tpu_custom_call.1} parent=71 // pred_region
          %460 = dma.done [#allocation6], 1024
        $region84: #{tpu_custom_call.1} parent=71 // pred_fallthru
          _
        // Predicated region
        $region85: #{tpu_custom_call.1} parent=71 // pred_check
          %p461 = pneg %p242
        $region86: #{tpu_custom_call.1} parent=71 // pred_check_branch
          %463 = sbr.rel (%p461) target = $region88
        $region87: #{tpu_custom_call.1} parent=71 // pred_region
          %464 = dma.done [#allocation9], 1024
        $region88: #{tpu_custom_call.1} parent=71 // pred_fallthru
          _
        %s465 = sand.u32 %s40, 1
        %s466 = scalar_lea.sflag [#allocation3], %s465
        %s467 = sand.u32 %s40, 1
        %s468 = smul.addr %s467, 128
        %s469 = scalar_lea.vmem [#allocation2], %s468
        %p470 = pneg %p53
        %p471 = pneg %p50
        %p472 = pneg %p74
        %p473 = pneg %p71
        %p474 = pneg %p95
        %p475 = pneg %p92
        %p476 = pneg %p116
        %p477 = pneg %p113
        %p478 = pneg %p137
        %p479 = pneg %p134
        %p480 = pneg %p158
        %p481 = pneg %p155
        %p482 = pneg %p179
        %p483 = pneg %p176
        %p484 = pneg %p200
        %p485 = pneg %p197
        %p486 = pneg %p221
        %p487 = pneg %p218
        %p488 = pneg %p242
        %p489 = pneg %p239
        %p490 = pneg %p263
        %p491 = pneg %p260
        %p492 = pneg %p284
        %p493 = pneg %p281
        %p494 = pneg %p305
        %p495 = pneg %p302
        %p496 = pneg %p331
        %p497 = pneg %p328
        %s498 = sand.u32 %s318, 1
        %s499 = scalar_lea.sflag [#allocation4], %s498
        %s500 = sand.u32 %s318, 1
        %s501 = smul.addr %s500, 128
        %s502 = scalar_lea.vmem [#allocation10], %s501
        %s503 = smul.u32 16, %s32
        %s504 = smul.u32 16, %s32
        %v506 = vld [vmem:[%s448] sm:$0xff]
        %v507 = vld [vmem:[%s448 + $0x8] sm:$0xff]
        %v508 = vld [vmem:[%s448 + $0x10] sm:$0xff]
        %v509 = vld [vmem:[%s448 + $0x18] sm:$0xff]
        %v510 = vld [vmem:[%s448 + $0x20] sm:$0xff]
        %v511 = vld [vmem:[%s448 + $0x28] sm:$0xff]
        %v512 = vld [vmem:[%s448 + $0x30] sm:$0xff]
        %v513 = vld [vmem:[%s448 + $0x38] sm:$0xff]
        %v514 = vld [vmem:[%s448 + $0x40] sm:$0xff]
        %v515 = vld [vmem:[%s448 + $0x48] sm:$0xff]
        %v516 = vld [vmem:[%s448 + $0x50] sm:$0xff]
        %v517 = vld [vmem:[%s448 + $0x58] sm:$0xff]
        %v518 = vld [vmem:[%s448 + $0x60] sm:$0xff]
        %v519 = vld [vmem:[%s448 + $0x68] sm:$0xff]
        %v520 = vld [vmem:[%s448 + $0x70] sm:$0xff]
        %v521 = vld [vmem:[%s448 + $0x78] sm:$0xff]
        %v522 = vpack.c.bf16 %v507, %v506
        %v523 = vpack.c.bf16 %v509, %v508
        %v524 = vpack.c.bf16 %v511, %v510
        %v525 = vpack.c.bf16 %v513, %v512
        %v526 = vpack.c.bf16 %v515, %v514
        %v527 = vpack.c.bf16 %v517, %v516
        %v528 = vpack.c.bf16 %v519, %v518
        %v529 = vpack.c.bf16 %v521, %v520
        %v530 = vld [vmem:[#allocation5] sm:$0xf]
        %v531 = vld [vmem:[#allocation5 + $0x4] sm:$0xf]
        %v532 = vld [vmem:[#allocation5 + $0x8] sm:$0xf]
        %v533 = vld [vmem:[#allocation5 + $0xc] sm:$0xf]
        %v534 = vld [vmem:[#allocation5 + $0x10] sm:$0xf]
        %v535 = vld [vmem:[#allocation5 + $0x14] sm:$0xf]
        %v536 = vld [vmem:[#allocation5 + $0x18] sm:$0xf]
        %v537 = vld [vmem:[#allocation5 + $0x1c] sm:$0xf]
        %v538 = vld [vmem:[#allocation5 + $0x20] sm:$0xf]
        %v539 = vld [vmem:[#allocation5 + $0x24] sm:$0xf]
        %v540 = vld [vmem:[#allocation5 + $0x28] sm:$0xf]
        %v541 = vld [vmem:[#allocation5 + $0x2c] sm:$0xf]
        %v542 = vld [vmem:[#allocation5 + $0x30] sm:$0xf]
        %v543 = vld [vmem:[#allocation5 + $0x34] sm:$0xf]
        %v544 = vld [vmem:[#allocation5 + $0x38] sm:$0xf]
        %v545 = vld [vmem:[#allocation5 + $0x3c] sm:$0xf]
        %v546 = vld [vmem:[%s2] sm:$0x1]
        %v548 = vlaneseq
        %v549 = vshrl.u32 %v548, 7
        %v550 = vsub.s32 0, %v549
        %v551 = vrot.slane %v546, %v550
        %v569 = vunpack.c.l.b16 %v530
        %v570 = vunpack.c.l.b16 %v531
        %v571 = vunpack.c.l.b16 %v532
        %v572 = vunpack.c.l.b16 %v533
        %v573 = vunpack.c.l.b16 %v534
        %v574 = vunpack.c.l.b16 %v535
        %v575 = vunpack.c.l.b16 %v536
        %v576 = vunpack.c.l.b16 %v537
        %v577 = vunpack.c.l.b16 %v538
        %v578 = vunpack.c.l.b16 %v539
        %v579 = vunpack.c.l.b16 %v540
        %v580 = vunpack.c.l.b16 %v541
        %v581 = vunpack.c.l.b16 %v542
        %v582 = vunpack.c.l.b16 %v543
        %v583 = vunpack.c.l.b16 %v544
        %v584 = vunpack.c.l.b16 %v545
        %v585 = vpack.c.b16 %v570, %v569
        %v586 = vpack.c.b16 %v572, %v571
        %v587 = vpack.c.b16 %v574, %v573
        %v588 = vpack.c.b16 %v576, %v575
        %v589 = vpack.c.b16 %v578, %v577
        %v590 = vpack.c.b16 %v580, %v579
        %v591 = vpack.c.b16 %v582, %v581
        %v592 = vpack.c.b16 %v584, %v583
        %601 = vmatprep.subr.bf16.mxu0 0
        %602 = vmatpush1.bf16.msra.mxu0 %v585
        %603 = vmatprep.subr.bf16.mxu0 0
        %604 = vmatpush1.bf16.msra.mxu0 %v586
        %605 = vmatprep.subr.bf16.mxu0 0
        %606 = vmatpush1.bf16.msra.mxu0 %v587
        %607 = vmatprep.subr.bf16.mxu0 0
        %608 = vmatpush1.bf16.msra.mxu0 %v588
        %609 = vmatprep.subr.bf16.mxu0 0
        %610 = vmatpush1.bf16.msra.mxu0 %v589
        %611 = vmatprep.subr.bf16.mxu0 0
        %612 = vmatpush1.bf16.msra.mxu0 %v590
        %613 = vmatprep.subr.bf16.mxu0 0
        %614 = vmatpush1.bf16.msra.mxu0 %v591
        %615 = vmatprep.subr.bf16.mxu0 0
        %616 = vmatpush1.bf16.msra.mxu0 %v592
        %617 = vmatprep.subr.bf16.mxu0 0
        %618 = vmatpush1.bf16.msra.mxu0 0
        %619 = vmatprep.subr.bf16.mxu0 0
        %620 = vmatpush1.bf16.msra.mxu0 0
        %621 = vmatprep.subr.bf16.mxu0 0
        %622 = vmatpush1.bf16.msra.mxu0 0
        %623 = vmatprep.subr.bf16.mxu0 0
        %624 = vmatpush1.bf16.msra.mxu0 0
        %625 = vmatprep.subr.bf16.mxu0 0
        %626 = vmatpush1.bf16.msra.mxu0 0
        %627 = vmatprep.subr.bf16.mxu0 0
        %628 = vmatpush1.bf16.msra.mxu0 0
        %629 = vmatprep.subr.bf16.mxu0 0
        %630 = vmatpush1.bf16.msra.mxu0 0
        %631 = vmatprep.subr.bf16.mxu0 0
        %632 = vmatpush1.bf16.msra.mxu0 0
        %633 = vmatprep.mubr.bf16.mxu0 0
        %634 = vmatmul.mubr.bf16.gmra.mrb[0].mxu0 %v522
        %v635 = vpop.f32.mrb[0].mxu0
        %v636 = vadd.f32 %v551, %v635
        %v637 = vpop.f32.mrb[0].mxu0
        %v638 = vpop.f32.mrb[0].mxu0
        %v639 = vadd.f32 %v551, %v638
        %v640 = vpop.f32.mrb[0].mxu0
        %641 = vmatprep.mubr.bf16.mxu0 0
        %642 = vmatmul.mubr.bf16.gmra.mrb[0].mxu0 %v523
        %v643 = vpop.f32.mrb[0].mxu0
        %v644 = vadd.f32 %v551, %v643
        %v645 = vpop.f32.mrb[0].mxu0
        %v646 = vpop.f32.mrb[0].mxu0
        %v647 = vadd.f32 %v551, %v646
        %v648 = vpop.f32.mrb[0].mxu0
        %649 = vmatprep.mubr.bf16.mxu0 0
        %650 = vmatmul.mubr.bf16.gmra.mrb[0].mxu0 %v524
        %v651 = vpop.f32.mrb[0].mxu0
        %v652 = vadd.f32 %v551, %v651
        %v653 = vpop.f32.mrb[0].mxu0
        %v654 = vpop.f32.mrb[0].mxu0
        %v655 = vadd.f32 %v551, %v654
        %v656 = vpop.f32.mrb[0].mxu0
        %657 = vmatprep.mubr.bf16.mxu0 0
        %658 = vmatmul.mubr.bf16.gmra.mrb[0].mxu0 %v525
        %v659 = vpop.f32.mrb[0].mxu0
        %v660 = vadd.f32 %v551, %v659
        %v661 = vpop.f32.mrb[0].mxu0
        %v662 = vpop.f32.mrb[0].mxu0
        %v663 = vadd.f32 %v551, %v662
        %v664 = vpop.f32.mrb[0].mxu0
        %665 = vmatprep.mubr.bf16.mxu0 0
        %666 = vmatmul.mubr.bf16.gmra.mrb[0].mxu0 %v526
        %v667 = vpop.f32.mrb[0].mxu0
        %v668 = vadd.f32 %v551, %v667
        %v669 = vpop.f32.mrb[0].mxu0
        %v670 = vpop.f32.mrb[0].mxu0
        %v671 = vadd.f32 %v551, %v670
        %v672 = vpop.f32.mrb[0].mxu0
        %673 = vmatprep.mubr.bf16.mxu0 0
        %674 = vmatmul.mubr.bf16.gmra.mrb[0].mxu0 %v527
        %v675 = vpop.f32.mrb[0].mxu0
        %v676 = vadd.f32 %v551, %v675
        %v677 = vpop.f32.mrb[0].mxu0
        %v678 = vpop.f32.mrb[0].mxu0
        %v679 = vadd.f32 %v551, %v678
        %v680 = vpop.f32.mrb[0].mxu0
        %681 = vmatprep.mubr.bf16.mxu0 0
        %682 = vmatmul.mubr.bf16.gmra.mrb[0].mxu0 %v528
        %v683 = vpop.f32.mrb[0].mxu0
        %v684 = vadd.f32 %v551, %v683
        %v685 = vpop.f32.mrb[0].mxu0
        %v686 = vpop.f32.mrb[0].mxu0
        %v687 = vadd.f32 %v551, %v686
        %v688 = vpop.f32.mrb[0].mxu0
        %689 = vmatprep.mubr.bf16.mxu0 0
        %690 = vmatmul.mubr.bf16.gmra.mrb[0].mxu0 %v529
        %v691 = vpop.f32.mrb[0].mxu0
        %v692 = vadd.f32 %v551, %v691
        %v693 = vpop.f32.mrb[0].mxu0
        %v694 = vpop.f32.mrb[0].mxu0
        %v695 = vadd.f32 %v551, %v694
        %v696 = vpop.f32.mrb[0].mxu0
        %697 = vdwg.mxu0
        %698 = vadd.xlane.f32.xlu0 %v636
        %v699 = vpop.xlane.xlu0 %698
        %700 = vadd.xlane.f32.xlu0 %v639
        %v701 = vpop.xlane.xlu0 %700
        %702 = vadd.xlane.f32.xlu0 %v644
        %v703 = vpop.xlane.xlu0 %702
        %704 = vadd.xlane.f32.xlu0 %v647
        %v705 = vpop.xlane.xlu0 %704
        %706 = vadd.xlane.f32.xlu0 %v652
        %v707 = vpop.xlane.xlu0 %706
        %708 = vadd.xlane.f32.xlu0 %v655
        %v709 = vpop.xlane.xlu0 %708
        %710 = vadd.xlane.f32.xlu0 %v660
        %v711 = vpop.xlane.xlu0 %710
        %712 = vadd.xlane.f32.xlu0 %v663
        %v713 = vpop.xlane.xlu0 %712
        %714 = vadd.xlane.f32.xlu0 %v668
        %v715 = vpop.xlane.xlu0 %714
        %716 = vadd.xlane.f32.xlu0 %v671
        %v717 = vpop.xlane.xlu0 %716
        %718 = vadd.xlane.f32.xlu0 %v676
        %v719 = vpop.xlane.xlu0 %718
        %720 = vadd.xlane.f32.xlu0 %v679
        %v721 = vpop.xlane.xlu0 %720
        %722 = vadd.xlane.f32.xlu0 %v684
        %v723 = vpop.xlane.xlu0 %722
        %724 = vadd.xlane.f32.xlu0 %v687
        %v725 = vpop.xlane.xlu0 %724
        %726 = vadd.xlane.f32.xlu0 %v692
        %v727 = vpop.xlane.xlu0 %726
        %728 = vadd.xlane.f32.xlu0 %v695
        %v729 = vpop.xlane.xlu0 %728
        %v730 = vmul.f32 %v636, %v636
        %v731 = vmul.f32 %v639, %v639
        %v732 = vmul.f32 %v644, %v644
        %v733 = vmul.f32 %v647, %v647
        %v734 = vmul.f32 %v652, %v652
        %v735 = vmul.f32 %v655, %v655
        %v736 = vmul.f32 %v660, %v660
        %v737 = vmul.f32 %v663, %v663
        %v738 = vmul.f32 %v668, %v668
        %v739 = vmul.f32 %v671, %v671
        %v740 = vmul.f32 %v676, %v676
        %v741 = vmul.f32 %v679, %v679
        %v742 = vmul.f32 %v684, %v684
        %v743 = vmul.f32 %v687, %v687
        %v744 = vmul.f32 %v692, %v692
        %v745 = vmul.f32 %v695, %v695
        %746 = vadd.xlane.f32.xlu0 %v730
        %v747 = vpop.xlane.xlu0 %746
        %748 = vadd.xlane.f32.xlu0 %v731
        %v749 = vpop.xlane.xlu0 %748
        %750 = vadd.xlane.f32.xlu0 %v732
        %v751 = vpop.xlane.xlu0 %750
        %752 = vadd.xlane.f32.xlu0 %v733
        %v753 = vpop.xlane.xlu0 %752
        %754 = vadd.xlane.f32.xlu0 %v734
        %v755 = vpop.xlane.xlu0 %754
        %756 = vadd.xlane.f32.xlu0 %v735
        %v757 = vpop.xlane.xlu0 %756
        %758 = vadd.xlane.f32.xlu0 %v736
        %v759 = vpop.xlane.xlu0 %758
        %760 = vadd.xlane.f32.xlu0 %v737
        %v761 = vpop.xlane.xlu0 %760
        %762 = vadd.xlane.f32.xlu0 %v738
        %v763 = vpop.xlane.xlu0 %762
        %764 = vadd.xlane.f32.xlu0 %v739
        %v765 = vpop.xlane.xlu0 %764
        %766 = vadd.xlane.f32.xlu0 %v740
        %v767 = vpop.xlane.xlu0 %766
        %768 = vadd.xlane.f32.xlu0 %v741
        %v769 = vpop.xlane.xlu0 %768
        %770 = vadd.xlane.f32.xlu0 %v742
        %v771 = vpop.xlane.xlu0 %770
        %772 = vadd.xlane.f32.xlu0 %v743
        %v773 = vpop.xlane.xlu0 %772
        %774 = vadd.xlane.f32.xlu0 %v744
        %v775 = vpop.xlane.xlu0 %774
        %776 = vadd.xlane.f32.xlu0 %v745
        %v777 = vpop.xlane.xlu0 %776
        %v778 = vmul.f32 %v699, 0.0078125
        %v779 = vmul.f32 %v701, 0.0078125
        %v780 = vmul.f32 %v703, 0.0078125
        %v781 = vmul.f32 %v705, 0.0078125
        %v782 = vmul.f32 %v707, 0.0078125
        %v783 = vmul.f32 %v709, 0.0078125
        %v784 = vmul.f32 %v711, 0.0078125
        %v785 = vmul.f32 %v713, 0.0078125
        %v786 = vmul.f32 %v715, 0.0078125
        %v787 = vmul.f32 %v717, 0.0078125
        %v788 = vmul.f32 %v719, 0.0078125
        %v789 = vmul.f32 %v721, 0.0078125
        %v790 = vmul.f32 %v723, 0.0078125
        %v791 = vmul.f32 %v725, 0.0078125
        %v792 = vmul.f32 %v727, 0.0078125
        %v793 = vmul.f32 %v729, 0.0078125
        %v794 = vmul.f32 %v747, 0.0078125
        %v795 = vmul.f32 %v749, 0.0078125
        %v796 = vmul.f32 %v751, 0.0078125
        %v797 = vmul.f32 %v753, 0.0078125
        %v798 = vmul.f32 %v755, 0.0078125
        %v799 = vmul.f32 %v757, 0.0078125
        %v800 = vmul.f32 %v759, 0.0078125
        %v801 = vmul.f32 %v761, 0.0078125
        %v802 = vmul.f32 %v763, 0.0078125
        %v803 = vmul.f32 %v765, 0.0078125
        %v804 = vmul.f32 %v767, 0.0078125
        %v805 = vmul.f32 %v769, 0.0078125
        %v806 = vmul.f32 %v771, 0.0078125
        %v807 = vmul.f32 %v773, 0.0078125
        %v808 = vmul.f32 %v775, 0.0078125
        %v809 = vmul.f32 %v777, 0.0078125
        %v810 = vmul.f32 %v778, %v778
        %v811 = vmul.f32 %v779, %v779
        %v812 = vmul.f32 %v780, %v780
        %v813 = vmul.f32 %v781, %v781
        %v814 = vmul.f32 %v782, %v782
        %v815 = vmul.f32 %v783, %v783
        %v816 = vmul.f32 %v784, %v784
        %v817 = vmul.f32 %v785, %v785
        %v818 = vmul.f32 %v786, %v786
        %v819 = vmul.f32 %v787, %v787
        %v820 = vmul.f32 %v788, %v788
        %v821 = vmul.f32 %v789, %v789
        %v822 = vmul.f32 %v790, %v790
        %v823 = vmul.f32 %v791, %v791
        %v824 = vmul.f32 %v792, %v792
        %v825 = vmul.f32 %v793, %v793
        %v826 = vsub.f32 %v794, %v810
        %v827 = vsub.f32 %v795, %v811
        %v828 = vsub.f32 %v796, %v812
        %v829 = vsub.f32 %v797, %v813
        %v830 = vsub.f32 %v798, %v814
        %v831 = vsub.f32 %v799, %v815
        %v832 = vsub.f32 %v800, %v816
        %v833 = vsub.f32 %v801, %v817
        %v834 = vsub.f32 %v802, %v818
        %v835 = vsub.f32 %v803, %v819
        %v836 = vsub.f32 %v804, %v820
        %v837 = vsub.f32 %v805, %v821
        %v838 = vsub.f32 %v806, %v822
        %v839 = vsub.f32 %v807, %v823
        %v840 = vsub.f32 %v808, %v824
        %v841 = vsub.f32 %v809, %v825
        %v842 = vmax.f32 %v826, 0.0
        %v843 = vmax.f32 %v827, 0.0
        %v844 = vmax.f32 %v828, 0.0
        %v845 = vmax.f32 %v829, 0.0
        %v846 = vmax.f32 %v830, 0.0
        %v847 = vmax.f32 %v831, 0.0
        %v848 = vmax.f32 %v832, 0.0
        %v849 = vmax.f32 %v833, 0.0
        %v850 = vmax.f32 %v834, 0.0
        %v851 = vmax.f32 %v835, 0.0
        %v852 = vmax.f32 %v836, 0.0
        %v853 = vmax.f32 %v837, 0.0
        %v854 = vmax.f32 %v838, 0.0
        %v855 = vmax.f32 %v839, 0.0
        %v856 = vmax.f32 %v840, 0.0
        %v857 = vmax.f32 %v841, 0.0
        %v858 = vsub.f32 %v636, %v778
        %v859 = vsub.f32 %v639, %v779
        %v860 = vsub.f32 %v644, %v780
        %v861 = vsub.f32 %v647, %v781
        %v862 = vsub.f32 %v652, %v782
        %v863 = vsub.f32 %v655, %v783
        %v864 = vsub.f32 %v660, %v784
        %v865 = vsub.f32 %v663, %v785
        %v866 = vsub.f32 %v668, %v786
        %v867 = vsub.f32 %v671, %v787
        %v868 = vsub.f32 %v676, %v788
        %v869 = vsub.f32 %v679, %v789
        %v870 = vsub.f32 %v684, %v790
        %v871 = vsub.f32 %v687, %v791
        %v872 = vsub.f32 %v692, %v792
        %v873 = vsub.f32 %v695, %v793
        %v874 = vadd.f32 %v842, 1e-05
        %v875 = vadd.f32 %v843, 1e-05
        %v876 = vadd.f32 %v844, 1e-05
        %v877 = vadd.f32 %v845, 1e-05
        %v878 = vadd.f32 %v846, 1e-05
        %v879 = vadd.f32 %v847, 1e-05
        %v880 = vadd.f32 %v848, 1e-05
        %v881 = vadd.f32 %v849, 1e-05
        %v882 = vadd.f32 %v850, 1e-05
        %v883 = vadd.f32 %v851, 1e-05
        %v884 = vadd.f32 %v852, 1e-05
        %v885 = vadd.f32 %v853, 1e-05
        %v886 = vadd.f32 %v854, 1e-05
        %v887 = vadd.f32 %v855, 1e-05
        %v888 = vadd.f32 %v856, 1e-05
        %v889 = vadd.f32 %v857, 1e-05
        %v890 = vrsqrt.pop %v874
        %v891 = vrsqrt.pop %v875
        %v892 = vrsqrt.pop %v876
        %v893 = vrsqrt.pop %v877
        %v894 = vrsqrt.pop %v878
        %v895 = vrsqrt.pop %v879
        %v896 = vrsqrt.pop %v880
        %v897 = vrsqrt.pop %v881
        %v898 = vrsqrt.pop %v882
        %v899 = vrsqrt.pop %v883
        %v900 = vrsqrt.pop %v884
        %v901 = vrsqrt.pop %v885
        %v902 = vrsqrt.pop %v886
        %v903 = vrsqrt.pop %v887
        %v904 = vrsqrt.pop %v888
        %v905 = vrsqrt.pop %v889
        %v906 = vmul.f32 %v858, %v890
        %v907 = vmul.f32 %v859, %v891
        %v908 = vmul.f32 %v860, %v892
        %v909 = vmul.f32 %v861, %v893
        %v910 = vmul.f32 %v862, %v894
        %v911 = vmul.f32 %v863, %v895
        %v912 = vmul.f32 %v864, %v896
        %v913 = vmul.f32 %v865, %v897
        %v914 = vmul.f32 %v866, %v898
        %v915 = vmul.f32 %v867, %v899
        %v916 = vmul.f32 %v868, %v900
        %v917 = vmul.f32 %v869, %v901
        %v918 = vmul.f32 %v870, %v902
        %v919 = vmul.f32 %v871, %v903
        %v920 = vmul.f32 %v872, %v904
        %v921 = vmul.f32 %v873, %v905
        %v922 = vld [vmem:[%s3] sm:$0x1]
        %v924 = vlaneseq
        %v925 = vshrl.u32 %v924, 7
        %v926 = vsub.s32 0, %v925
        %v927 = vrot.slane %v922, %v926
        %v929 = vmul.f32 %v906, %v927
        %v930 = vmul.f32 %v907, %v927
        %v931 = vmul.f32 %v908, %v927
        %v932 = vmul.f32 %v909, %v927
        %v933 = vmul.f32 %v910, %v927
        %v934 = vmul.f32 %v911, %v927
        %v935 = vmul.f32 %v912, %v927
        %v936 = vmul.f32 %v913, %v927
        %v937 = vmul.f32 %v914, %v927
        %v938 = vmul.f32 %v915, %v927
        %v939 = vmul.f32 %v916, %v927
        %v940 = vmul.f32 %v917, %v927
        %v941 = vmul.f32 %v918, %v927
        %v942 = vmul.f32 %v919, %v927
        %v943 = vmul.f32 %v920, %v927
        %v944 = vmul.f32 %v921, %v927
        %v945 = vld [vmem:[%s4] sm:$0x1]
        %v947 = vlaneseq
        %v948 = vshrl.u32 %v947, 7
        %v949 = vsub.s32 0, %v948
        %v950 = vrot.slane %v945, %v949
        %v952 = vadd.f32 %v929, %v950
        %v953 = vadd.f32 %v930, %v950
        %v954 = vadd.f32 %v931, %v950
        %v955 = vadd.f32 %v932, %v950
        %v956 = vadd.f32 %v933, %v950
        %v957 = vadd.f32 %v934, %v950
        %v958 = vadd.f32 %v935, %v950
        %v959 = vadd.f32 %v936, %v950
        %v960 = vadd.f32 %v937, %v950
        %v961 = vadd.f32 %v938, %v950
        %v962 = vadd.f32 %v939, %v950
        %v963 = vadd.f32 %v940, %v950
        %v964 = vadd.f32 %v941, %v950
        %v965 = vadd.f32 %v942, %v950
        %v966 = vadd.f32 %v943, %v950
        %v967 = vadd.f32 %v944, %v950
        %v968 = vmax.f32 %v952, 0.0
        %v969 = vmax.f32 %v953, 0.0
        %v970 = vmax.f32 %v954, 0.0
        %v971 = vmax.f32 %v955, 0.0
        %v972 = vmax.f32 %v956, 0.0
        %v973 = vmax.f32 %v957, 0.0
        %v974 = vmax.f32 %v958, 0.0
        %v975 = vmax.f32 %v959, 0.0
        %v976 = vmax.f32 %v960, 0.0
        %v977 = vmax.f32 %v961, 0.0
        %v978 = vmax.f32 %v962, 0.0
        %v979 = vmax.f32 %v963, 0.0
        %v980 = vmax.f32 %v964, 0.0
        %v981 = vmax.f32 %v965, 0.0
        %v982 = vmax.f32 %v966, 0.0
        %v983 = vmax.f32 %v967, 0.0
        %v984 = vpack.c.bf16 %v969, %v968
        %v985 = vpack.c.bf16 %v971, %v970
        %v986 = vpack.c.bf16 %v973, %v972
        %v987 = vpack.c.bf16 %v975, %v974
        %v988 = vpack.c.bf16 %v977, %v976
        %v989 = vpack.c.bf16 %v979, %v978
        %v990 = vpack.c.bf16 %v981, %v980
        %v991 = vpack.c.bf16 %v983, %v982
        %v992 = vld [vmem:[#allocation7] sm:$0xf]
        %v993 = vld [vmem:[#allocation7 + $0x4] sm:$0xf]
        %v994 = vld [vmem:[#allocation7 + $0x8] sm:$0xf]
        %v995 = vld [vmem:[#allocation7 + $0xc] sm:$0xf]
        %v996 = vld [vmem:[#allocation7 + $0x10] sm:$0xf]
        %v997 = vld [vmem:[#allocation7 + $0x14] sm:$0xf]
        %v998 = vld [vmem:[#allocation7 + $0x18] sm:$0xf]
        %v999 = vld [vmem:[#allocation7 + $0x1c] sm:$0xf]
        %v1000 = vld [vmem:[#allocation7 + $0x20] sm:$0xf]
        %v1001 = vld [vmem:[#allocation7 + $0x24] sm:$0xf]
        %v1002 = vld [vmem:[#allocation7 + $0x28] sm:$0xf]
        %v1003 = vld [vmem:[#allocation7 + $0x2c] sm:$0xf]
        %v1004 = vld [vmem:[#allocation7 + $0x30] sm:$0xf]
        %v1005 = vld [vmem:[#allocation7 + $0x34] sm:$0xf]
        %v1006 = vld [vmem:[#allocation7 + $0x38] sm:$0xf]
        %v1007 = vld [vmem:[#allocation7 + $0x3c] sm:$0xf]
        %v1008 = vld [vmem:[%s6] sm:$0x1]
        %v1010 = vlaneseq
        %v1011 = vshrl.u32 %v1010, 7
        %v1012 = vsub.s32 0, %v1011
        %v1013 = vrot.slane %v1008, %v1012
        %v1031 = vunpack.c.l.b16 %v992
        %v1032 = vunpack.c.l.b16 %v993
        %v1033 = vunpack.c.l.b16 %v994
        %v1034 = vunpack.c.l.b16 %v995
        %v1035 = vunpack.c.l.b16 %v996
        %v1036 = vunpack.c.l.b16 %v997
        %v1037 = vunpack.c.l.b16 %v998
        %v1038 = vunpack.c.l.b16 %v999
        %v1039 = vunpack.c.l.b16 %v1000
        %v1040 = vunpack.c.l.b16 %v1001
        %v1041 = vunpack.c.l.b16 %v1002
        %v1042 = vunpack.c.l.b16 %v1003
        %v1043 = vunpack.c.l.b16 %v1004
        %v1044 = vunpack.c.l.b16 %v1005
        %v1045 = vunpack.c.l.b16 %v1006
        %v1046 = vunpack.c.l.b16 %v1007
        %v1047 = vpack.c.b16 %v1032, %v1031
        %v1048 = vpack.c.b16 %v1034, %v1033
        %v1049 = vpack.c.b16 %v1036, %v1035
        %v1050 = vpack.c.b16 %v1038, %v1037
        %v1051 = vpack.c.b16 %v1040, %v1039
        %v1052 = vpack.c.b16 %v1042, %v1041
        %v1053 = vpack.c.b16 %v1044, %v1043
        %v1054 = vpack.c.b16 %v1046, %v1045
        %1063 = vmatprep.subr.bf16.mxu0 0
        %1064 = vmatpush1.bf16.msra.mxu0 %v1047
        %1065 = vmatprep.subr.bf16.mxu0 0
        %1066 = vmatpush1.bf16.msra.mxu0 %v1048
        %1067 = vmatprep.subr.bf16.mxu0 0
        %1068 = vmatpush1.bf16.msra.mxu0 %v1049
        %1069 = vmatprep.subr.bf16.mxu0 0
        %1070 = vmatpush1.bf16.msra.mxu0 %v1050
        %1071 = vmatprep.subr.bf16.mxu0 0
        %1072 = vmatpush1.bf16.msra.mxu0 %v1051
        %1073 = vmatprep.subr.bf16.mxu0 0
        %1074 = vmatpush1.bf16.msra.mxu0 %v1052
        %1075 = vmatprep.subr.bf16.mxu0 0
        %1076 = vmatpush1.bf16.msra.mxu0 %v1053
        %1077 = vmatprep.subr.bf16.mxu0 0
        %1078 = vmatpush1.bf16.msra.mxu0 %v1054
        %1079 = vmatprep.subr.bf16.mxu0 0
        %1080 = vmatpush1.bf16.msra.mxu0 0
        %1081 = vmatprep.subr.bf16.mxu0 0
        %1082 = vmatpush1.bf16.msra.mxu0 0
        %1083 = vmatprep.subr.bf16.mxu0 0
        %1084 = vmatpush1.bf16.msra.mxu0 0
        %1085 = vmatprep.subr.bf16.mxu0 0
        %1086 = vmatpush1.bf16.msra.mxu0 0
        %1087 = vmatprep.subr.bf16.mxu0 0
        %1088 = vmatpush1.bf16.msra.mxu0 0
        %1089 = vmatprep.subr.bf16.mxu0 0
        %1090 = vmatpush1.bf16.msra.mxu0 0
        %1091 = vmatprep.subr.bf16.mxu0 0
        %1092 = vmatpush1.bf16.msra.mxu0 0
        %1093 = vmatprep.subr.bf16.mxu0 0
        %1094 = vmatpush1.bf16.msra.mxu0 0
        %1095 = vmatprep.mubr.bf16.mxu0 0
        %1096 = vmatmul.mubr.bf16.gmra.mrb[0].mxu0 %v984
        %v1097 = vpop.f32.mrb[0].mxu0
        %v1098 = vadd.f32 %v1013, %v1097
        %v1099 = vpop.f32.mrb[0].mxu0
        %v1100 = vpop.f32.mrb[0].mxu0
        %v1101 = vadd.f32 %v1013, %v1100
        %v1102 = vpop.f32.mrb[0].mxu0
        %1103 = vmatprep.mubr.bf16.mxu0 0
        %1104 = vmatmul.mubr.bf16.gmra.mrb[0].mxu0 %v985
        %v1105 = vpop.f32.mrb[0].mxu0
        %v1106 = vadd.f32 %v1013, %v1105
        %v1107 = vpop.f32.mrb[0].mxu0
        %v1108 = vpop.f32.mrb[0].mxu0
        %v1109 = vadd.f32 %v1013, %v1108
        %v1110 = vpop.f32.mrb[0].mxu0
        %1111 = vmatprep.mubr.bf16.mxu0 0
        %1112 = vmatmul.mubr.bf16.gmra.mrb[0].mxu0 %v986
        %v1113 = vpop.f32.mrb[0].mxu0
        %v1114 = vadd.f32 %v1013, %v1113
        %v1115 = vpop.f32.mrb[0].mxu0
        %v1116 = vpop.f32.mrb[0].mxu0
        %v1117 = vadd.f32 %v1013, %v1116
        %v1118 = vpop.f32.mrb[0].mxu0
        %1119 = vmatprep.mubr.bf16.mxu0 0
        %1120 = vmatmul.mubr.bf16.gmra.mrb[0].mxu0 %v987
        %v1121 = vpop.f32.mrb[0].mxu0
        %v1122 = vadd.f32 %v1013, %v1121
        %v1123 = vpop.f32.mrb[0].mxu0
        %v1124 = vpop.f32.mrb[0].mxu0
        %v1125 = vadd.f32 %v1013, %v1124
        %v1126 = vpop.f32.mrb[0].mxu0
        %1127 = vmatprep.mubr.bf16.mxu0 0
        %1128 = vmatmul.mubr.bf16.gmra.mrb[0].mxu0 %v988
        %v1129 = vpop.f32.mrb[0].mxu0
        %v1130 = vadd.f32 %v1013, %v1129
        %v1131 = vpop.f32.mrb[0].mxu0
        %v1132 = vpop.f32.mrb[0].mxu0
        %v1133 = vadd.f32 %v1013, %v1132
        %v1134 = vpop.f32.mrb[0].mxu0
        %1135 = vmatprep.mubr.bf16.mxu0 0
        %1136 = vmatmul.mubr.bf16.gmra.mrb[0].mxu0 %v989
        %v1137 = vpop.f32.mrb[0].mxu0
        %v1138 = vadd.f32 %v1013, %v1137
        %v1139 = vpop.f32.mrb[0].mxu0
        %v1140 = vpop.f32.mrb[0].mxu0
        %v1141 = vadd.f32 %v1013, %v1140
        %v1142 = vpop.f32.mrb[0].mxu0
        %1143 = vmatprep.mubr.bf16.mxu0 0
        %1144 = vmatmul.mubr.bf16.gmra.mrb[0].mxu0 %v990
        %v1145 = vpop.f32.mrb[0].mxu0
        %v1146 = vadd.f32 %v1013, %v1145
        %v1147 = vpop.f32.mrb[0].mxu0
        %v1148 = vpop.f32.mrb[0].mxu0
        %v1149 = vadd.f32 %v1013, %v1148
        %v1150 = vpop.f32.mrb[0].mxu0
        %1151 = vmatprep.mubr.bf16.mxu0 0
        %1152 = vmatmul.mubr.bf16.gmra.mrb[0].mxu0 %v991
        %v1153 = vpop.f32.mrb[0].mxu0
        %v1154 = vadd.f32 %v1013, %v1153
        %v1155 = vpop.f32.mrb[0].mxu0
        %v1156 = vpop.f32.mrb[0].mxu0
        %v1157 = vadd.f32 %v1013, %v1156
        %v1158 = vpop.f32.mrb[0].mxu0
        %1159 = vdwg.mxu0
        %1160 = vadd.xlane.f32.xlu0 %v1098
        %v1161 = vpop.xlane.xlu0 %1160
        %1162 = vadd.xlane.f32.xlu0 %v1101
        %v1163 = vpop.xlane.xlu0 %1162
        %1164 = vadd.xlane.f32.xlu0 %v1106
        %v1165 = vpop.xlane.xlu0 %1164
        %1166 = vadd.xlane.f32.xlu0 %v1109
        %v1167 = vpop.xlane.xlu0 %1166
        %1168 = vadd.xlane.f32.xlu0 %v1114
        %v1169 = vpop.xlane.xlu0 %1168
        %1170 = vadd.xlane.f32.xlu0 %v1117
        %v1171 = vpop.xlane.xlu0 %1170
        %1172 = vadd.xlane.f32.xlu0 %v1122
        %v1173 = vpop.xlane.xlu0 %1172
        %1174 = vadd.xlane.f32.xlu0 %v1125
        %v1175 = vpop.xlane.xlu0 %1174
        %1176 = vadd.xlane.f32.xlu0 %v1130
        %v1177 = vpop.xlane.xlu0 %1176
        %1178 = vadd.xlane.f32.xlu0 %v1133
        %v1179 = vpop.xlane.xlu0 %1178
        %1180 = vadd.xlane.f32.xlu0 %v1138
        %v1181 = vpop.xlane.xlu0 %1180
        %1182 = vadd.xlane.f32.xlu0 %v1141
        %v1183 = vpop.xlane.xlu0 %1182
        %1184 = vadd.xlane.f32.xlu0 %v1146
        %v1185 = vpop.xlane.xlu0 %1184
        %1186 = vadd.xlane.f32.xlu0 %v1149
        %v1187 = vpop.xlane.xlu0 %1186
        %1188 = vadd.xlane.f32.xlu0 %v1154
        %v1189 = vpop.xlane.xlu0 %1188
        %1190 = vadd.xlane.f32.xlu0 %v1157
        %v1191 = vpop.xlane.xlu0 %1190
        %v1192 = vmul.f32 %v1098, %v1098
        %v1193 = vmul.f32 %v1101, %v1101
        %v1194 = vmul.f32 %v1106, %v1106
        %v1195 = vmul.f32 %v1109, %v1109
        %v1196 = vmul.f32 %v1114, %v1114
        %v1197 = vmul.f32 %v1117, %v1117
        %v1198 = vmul.f32 %v1122, %v1122
        %v1199 = vmul.f32 %v1125, %v1125
        %v1200 = vmul.f32 %v1130, %v1130
        %v1201 = vmul.f32 %v1133, %v1133
        %v1202 = vmul.f32 %v1138, %v1138
        %v1203 = vmul.f32 %v1141, %v1141
        %v1204 = vmul.f32 %v1146, %v1146
        %v1205 = vmul.f32 %v1149, %v1149
        %v1206 = vmul.f32 %v1154, %v1154
        %v1207 = vmul.f32 %v1157, %v1157
        %1208 = vadd.xlane.f32.xlu0 %v1192
        %v1209 = vpop.xlane.xlu0 %1208
        %1210 = vadd.xlane.f32.xlu0 %v1193
        %v1211 = vpop.xlane.xlu0 %1210
        %1212 = vadd.xlane.f32.xlu0 %v1194
        %v1213 = vpop.xlane.xlu0 %1212
        %1214 = vadd.xlane.f32.xlu0 %v1195
        %v1215 = vpop.xlane.xlu0 %1214
        %1216 = vadd.xlane.f32.xlu0 %v1196
        %v1217 = vpop.xlane.xlu0 %1216
        %1218 = vadd.xlane.f32.xlu0 %v1197
        %v1219 = vpop.xlane.xlu0 %1218
        %1220 = vadd.xlane.f32.xlu0 %v1198
        %v1221 = vpop.xlane.xlu0 %1220
        %1222 = vadd.xlane.f32.xlu0 %v1199
        %v1223 = vpop.xlane.xlu0 %1222
        %1224 = vadd.xlane.f32.xlu0 %v1200
        %v1225 = vpop.xlane.xlu0 %1224
        %1226 = vadd.xlane.f32.xlu0 %v1201
        %v1227 = vpop.xlane.xlu0 %1226
        %1228 = vadd.xlane.f32.xlu0 %v1202
        %v1229 = vpop.xlane.xlu0 %1228
        %1230 = vadd.xlane.f32.xlu0 %v1203
        %v1231 = vpop.xlane.xlu0 %1230
        %1232 = vadd.xlane.f32.xlu0 %v1204
        %v1233 = vpop.xlane.xlu0 %1232
        %1234 = vadd.xlane.f32.xlu0 %v1205
        %v1235 = vpop.xlane.xlu0 %1234
        %1236 = vadd.xlane.f32.xlu0 %v1206
        %v1237 = vpop.xlane.xlu0 %1236
        %1238 = vadd.xlane.f32.xlu0 %v1207
        %v1239 = vpop.xlane.xlu0 %1238
        %v1240 = vmul.f32 %v1161, 0.0078125
        %v1241 = vmul.f32 %v1163, 0.0078125
        %v1242 = vmul.f32 %v1165, 0.0078125
        %v1243 = vmul.f32 %v1167, 0.0078125
        %v1244 = vmul.f32 %v1169, 0.0078125
        %v1245 = vmul.f32 %v1171, 0.0078125
        %v1246 = vmul.f32 %v1173, 0.0078125
        %v1247 = vmul.f32 %v1175, 0.0078125
        %v1248 = vmul.f32 %v1177, 0.0078125
        %v1249 = vmul.f32 %v1179, 0.0078125
        %v1250 = vmul.f32 %v1181, 0.0078125
        %v1251 = vmul.f32 %v1183, 0.0078125
        %v1252 = vmul.f32 %v1185, 0.0078125
        %v1253 = vmul.f32 %v1187, 0.0078125
        %v1254 = vmul.f32 %v1189, 0.0078125
        %v1255 = vmul.f32 %v1191, 0.0078125
        %v1256 = vmul.f32 %v1209, 0.0078125
        %v1257 = vmul.f32 %v1211, 0.0078125
        %v1258 = vmul.f32 %v1213, 0.0078125
        %v1259 = vmul.f32 %v1215, 0.0078125
        %v1260 = vmul.f32 %v1217, 0.0078125
        %v1261 = vmul.f32 %v1219, 0.0078125
        %v1262 = vmul.f32 %v1221, 0.0078125
        %v1263 = vmul.f32 %v1223, 0.0078125
        %v1264 = vmul.f32 %v1225, 0.0078125
        %v1265 = vmul.f32 %v1227, 0.0078125
        %v1266 = vmul.f32 %v1229, 0.0078125
        %v1267 = vmul.f32 %v1231, 0.0078125
        %v1268 = vmul.f32 %v1233, 0.0078125
        %v1269 = vmul.f32 %v1235, 0.0078125
        %v1270 = vmul.f32 %v1237, 0.0078125
        %v1271 = vmul.f32 %v1239, 0.0078125
        %v1272 = vmul.f32 %v1240, %v1240
        %v1273 = vmul.f32 %v1241, %v1241
        %v1274 = vmul.f32 %v1242, %v1242
        %v1275 = vmul.f32 %v1243, %v1243
        %v1276 = vmul.f32 %v1244, %v1244
        %v1277 = vmul.f32 %v1245, %v1245
        %v1278 = vmul.f32 %v1246, %v1246
        %v1279 = vmul.f32 %v1247, %v1247
        %v1280 = vmul.f32 %v1248, %v1248
        %v1281 = vmul.f32 %v1249, %v1249
        %v1282 = vmul.f32 %v1250, %v1250
        %v1283 = vmul.f32 %v1251, %v1251
        %v1284 = vmul.f32 %v1252, %v1252
        %v1285 = vmul.f32 %v1253, %v1253
        %v1286 = vmul.f32 %v1254, %v1254
        %v1287 = vmul.f32 %v1255, %v1255
        %v1288 = vsub.f32 %v1256, %v1272
        %v1289 = vsub.f32 %v1257, %v1273
        %v1290 = vsub.f32 %v1258, %v1274
        %v1291 = vsub.f32 %v1259, %v1275
        %v1292 = vsub.f32 %v1260, %v1276
        %v1293 = vsub.f32 %v1261, %v1277
        %v1294 = vsub.f32 %v1262, %v1278
        %v1295 = vsub.f32 %v1263, %v1279
        %v1296 = vsub.f32 %v1264, %v1280
        %v1297 = vsub.f32 %v1265, %v1281
        %v1298 = vsub.f32 %v1266, %v1282
        %v1299 = vsub.f32 %v1267, %v1283
        %v1300 = vsub.f32 %v1268, %v1284
        %v1301 = vsub.f32 %v1269, %v1285
        %v1302 = vsub.f32 %v1270, %v1286
        %v1303 = vsub.f32 %v1271, %v1287
        %v1304 = vmax.f32 %v1288, 0.0
        %v1305 = vmax.f32 %v1289, 0.0
        %v1306 = vmax.f32 %v1290, 0.0
        %v1307 = vmax.f32 %v1291, 0.0
        %v1308 = vmax.f32 %v1292, 0.0
        %v1309 = vmax.f32 %v1293, 0.0
        %v1310 = vmax.f32 %v1294, 0.0
        %v1311 = vmax.f32 %v1295, 0.0
        %v1312 = vmax.f32 %v1296, 0.0
        %v1313 = vmax.f32 %v1297, 0.0
        %v1314 = vmax.f32 %v1298, 0.0
        %v1315 = vmax.f32 %v1299, 0.0
        %v1316 = vmax.f32 %v1300, 0.0
        %v1317 = vmax.f32 %v1301, 0.0
        %v1318 = vmax.f32 %v1302, 0.0
        %v1319 = vmax.f32 %v1303, 0.0
        %v1320 = vsub.f32 %v1098, %v1240
        %v1321 = vsub.f32 %v1101, %v1241
        %v1322 = vsub.f32 %v1106, %v1242
        %v1323 = vsub.f32 %v1109, %v1243
        %v1324 = vsub.f32 %v1114, %v1244
        %v1325 = vsub.f32 %v1117, %v1245
        %v1326 = vsub.f32 %v1122, %v1246
        %v1327 = vsub.f32 %v1125, %v1247
        %v1328 = vsub.f32 %v1130, %v1248
        %v1329 = vsub.f32 %v1133, %v1249
        %v1330 = vsub.f32 %v1138, %v1250
        %v1331 = vsub.f32 %v1141, %v1251
        %v1332 = vsub.f32 %v1146, %v1252
        %v1333 = vsub.f32 %v1149, %v1253
        %v1334 = vsub.f32 %v1154, %v1254
        %v1335 = vsub.f32 %v1157, %v1255
        %v1336 = vadd.f32 %v1304, 1e-05
        %v1337 = vadd.f32 %v1305, 1e-05
        %v1338 = vadd.f32 %v1306, 1e-05
        %v1339 = vadd.f32 %v1307, 1e-05
        %v1340 = vadd.f32 %v1308, 1e-05
        %v1341 = vadd.f32 %v1309, 1e-05
        %v1342 = vadd.f32 %v1310, 1e-05
        %v1343 = vadd.f32 %v1311, 1e-05
        %v1344 = vadd.f32 %v1312, 1e-05
        %v1345 = vadd.f32 %v1313, 1e-05
        %v1346 = vadd.f32 %v1314, 1e-05
        %v1347 = vadd.f32 %v1315, 1e-05
        %v1348 = vadd.f32 %v1316, 1e-05
        %v1349 = vadd.f32 %v1317, 1e-05
        %v1350 = vadd.f32 %v1318, 1e-05
        %v1351 = vadd.f32 %v1319, 1e-05
        %v1352 = vrsqrt.pop %v1336
        %v1353 = vrsqrt.pop %v1337
        %v1354 = vrsqrt.pop %v1338
        %v1355 = vrsqrt.pop %v1339
        %v1356 = vrsqrt.pop %v1340
        %v1357 = vrsqrt.pop %v1341
        %v1358 = vrsqrt.pop %v1342
        %v1359 = vrsqrt.pop %v1343
        %v1360 = vrsqrt.pop %v1344
        %v1361 = vrsqrt.pop %v1345
        %v1362 = vrsqrt.pop %v1346
        %v1363 = vrsqrt.pop %v1347
        %v1364 = vrsqrt.pop %v1348
        %v1365 = vrsqrt.pop %v1349
        %v1366 = vrsqrt.pop %v1350
        %v1367 = vrsqrt.pop %v1351
        %v1368 = vmul.f32 %v1320, %v1352
        %v1369 = vmul.f32 %v1321, %v1353
        %v1370 = vmul.f32 %v1322, %v1354
        %v1371 = vmul.f32 %v1323, %v1355
        %v1372 = vmul.f32 %v1324, %v1356
        %v1373 = vmul.f32 %v1325, %v1357
        %v1374 = vmul.f32 %v1326, %v1358
        %v1375 = vmul.f32 %v1327, %v1359
        %v1376 = vmul.f32 %v1328, %v1360
        %v1377 = vmul.f32 %v1329, %v1361
        %v1378 = vmul.f32 %v1330, %v1362
        %v1379 = vmul.f32 %v1331, %v1363
        %v1380 = vmul.f32 %v1332, %v1364
        %v1381 = vmul.f32 %v1333, %v1365
        %v1382 = vmul.f32 %v1334, %v1366
        %v1383 = vmul.f32 %v1335, %v1367
        %v1384 = vld [vmem:[%s7] sm:$0x1]
        %v1386 = vlaneseq
        %v1387 = vshrl.u32 %v1386, 7
        %v1388 = vsub.s32 0, %v1387
        %v1389 = vrot.slane %v1384, %v1388
        %v1391 = vmul.f32 %v1368, %v1389
        %v1392 = vmul.f32 %v1369, %v1389
        %v1393 = vmul.f32 %v1370, %v1389
        %v1394 = vmul.f32 %v1371, %v1389
        %v1395 = vmul.f32 %v1372, %v1389
        %v1396 = vmul.f32 %v1373, %v1389
        %v1397 = vmul.f32 %v1374, %v1389
        %v1398 = vmul.f32 %v1375, %v1389
        %v1399 = vmul.f32 %v1376, %v1389
        %v1400 = vmul.f32 %v1377, %v1389
        %v1401 = vmul.f32 %v1378, %v1389
        %v1402 = vmul.f32 %v1379, %v1389
        %v1403 = vmul.f32 %v1380, %v1389
        %v1404 = vmul.f32 %v1381, %v1389
        %v1405 = vmul.f32 %v1382, %v1389
        %v1406 = vmul.f32 %v1383, %v1389
        %v1407 = vld [vmem:[%s8] sm:$0x1]
        %v1409 = vlaneseq
        %v1410 = vshrl.u32 %v1409, 7
        %v1411 = vsub.s32 0, %v1410
        %v1412 = vrot.slane %v1407, %v1411
        %v1414 = vadd.f32 %v1391, %v1412
        %v1415 = vadd.f32 %v1392, %v1412
        %v1416 = vadd.f32 %v1393, %v1412
        %v1417 = vadd.f32 %v1394, %v1412
        %v1418 = vadd.f32 %v1395, %v1412
        %v1419 = vadd.f32 %v1396, %v1412
        %v1420 = vadd.f32 %v1397, %v1412
        %v1421 = vadd.f32 %v1398, %v1412
        %v1422 = vadd.f32 %v1399, %v1412
        %v1423 = vadd.f32 %v1400, %v1412
        %v1424 = vadd.f32 %v1401, %v1412
        %v1425 = vadd.f32 %v1402, %v1412
        %v1426 = vadd.f32 %v1403, %v1412
        %v1427 = vadd.f32 %v1404, %v1412
        %v1428 = vadd.f32 %v1405, %v1412
        %v1429 = vadd.f32 %v1406, %v1412
        %v1430 = vmax.f32 %v1414, 0.0
        %v1431 = vmax.f32 %v1415, 0.0
        %v1432 = vmax.f32 %v1416, 0.0
        %v1433 = vmax.f32 %v1417, 0.0
        %v1434 = vmax.f32 %v1418, 0.0
        %v1435 = vmax.f32 %v1419, 0.0
        %v1436 = vmax.f32 %v1420, 0.0
        %v1437 = vmax.f32 %v1421, 0.0
        %v1438 = vmax.f32 %v1422, 0.0
        %v1439 = vmax.f32 %v1423, 0.0
        %v1440 = vmax.f32 %v1424, 0.0
        %v1441 = vmax.f32 %v1425, 0.0
        %v1442 = vmax.f32 %v1426, 0.0
        %v1443 = vmax.f32 %v1427, 0.0
        %v1444 = vmax.f32 %v1428, 0.0
        %v1445 = vmax.f32 %v1429, 0.0
        %v1446 = vpack.c.bf16 %v1431, %v1430
        %v1447 = vpack.c.bf16 %v1433, %v1432
        %v1448 = vpack.c.bf16 %v1435, %v1434
        %v1449 = vpack.c.bf16 %v1437, %v1436
        %v1450 = vpack.c.bf16 %v1439, %v1438
        %v1451 = vpack.c.bf16 %v1441, %v1440
        %v1452 = vpack.c.bf16 %v1443, %v1442
        %v1453 = vpack.c.bf16 %v1445, %v1444
        %v1454 = vld [vmem:[#allocation8] sm:$0xf]
        %v1455 = vld [vmem:[#allocation8 + $0x4] sm:$0xf]
        %v1456 = vld [vmem:[#allocation8 + $0x8] sm:$0xf]
        %v1457 = vld [vmem:[#allocation8 + $0xc] sm:$0xf]
        %v1458 = vld [vmem:[#allocation8 + $0x10] sm:$0xf]
        %v1459 = vld [vmem:[#allocation8 + $0x14] sm:$0xf]
        %v1460 = vld [vmem:[#allocation8 + $0x18] sm:$0xf]
        %v1461 = vld [vmem:[#allocation8 + $0x1c] sm:$0xf]
        %v1462 = vld [vmem:[#allocation8 + $0x20] sm:$0xf]
        %v1463 = vld [vmem:[#allocation8 + $0x24] sm:$0xf]
        %v1464 = vld [vmem:[#allocation8 + $0x28] sm:$0xf]
        %v1465 = vld [vmem:[#allocation8 + $0x2c] sm:$0xf]
        %v1466 = vld [vmem:[#allocation8 + $0x30] sm:$0xf]
        %v1467 = vld [vmem:[#allocation8 + $0x34] sm:$0xf]
        %v1468 = vld [vmem:[#allocation8 + $0x38] sm:$0xf]
        %v1469 = vld [vmem:[#allocation8 + $0x3c] sm:$0xf]
        %v1470 = vld [vmem:[%s10] sm:$0x1]
        %v1472 = vlaneseq
        %v1473 = vshrl.u32 %v1472, 7
        %v1474 = vsub.s32 0, %v1473
        %v1475 = vrot.slane %v1470, %v1474
        %v1493 = vunpack.c.l.b16 %v1454
        %v1494 = vunpack.c.l.b16 %v1455
        %v1495 = vunpack.c.l.b16 %v1456
        %v1496 = vunpack.c.l.b16 %v1457
        %v1497 = vunpack.c.l.b16 %v1458
        %v1498 = vunpack.c.l.b16 %v1459
        %v1499 = vunpack.c.l.b16 %v1460
        %v1500 = vunpack.c.l.b16 %v1461
        %v1501 = vunpack.c.l.b16 %v1462
        %v1502 = vunpack.c.l.b16 %v1463
        %v1503 = vunpack.c.l.b16 %v1464
        %v1504 = vunpack.c.l.b16 %v1465
        %v1505 = vunpack.c.l.b16 %v1466
        %v1506 = vunpack.c.l.b16 %v1467
        %v1507 = vunpack.c.l.b16 %v1468
        %v1508 = vunpack.c.l.b16 %v1469
        %v1509 = vpack.c.b16 %v1494, %v1493
        %v1510 = vpack.c.b16 %v1496, %v1495
        %v1511 = vpack.c.b16 %v1498, %v1497
        %v1512 = vpack.c.b16 %v1500, %v1499
        %v1513 = vpack.c.b16 %v1502, %v1501
        %v1514 = vpack.c.b16 %v1504, %v1503
        %v1515 = vpack.c.b16 %v1506, %v1505
        %v1516 = vpack.c.b16 %v1508, %v1507
        %1525 = vmatprep.subr.bf16.mxu0 0
        %1526 = vmatpush1.bf16.msra.mxu0 %v1509
        %1527 = vmatprep.subr.bf16.mxu0 0
        %1528 = vmatpush1.bf16.msra.mxu0 %v1510
        %1529 = vmatprep.subr.bf16.mxu0 0
        %1530 = vmatpush1.bf16.msra.mxu0 %v1511
        %1531 = vmatprep.subr.bf16.mxu0 0
        %1532 = vmatpush1.bf16.msra.mxu0 %v1512
        %1533 = vmatprep.subr.bf16.mxu0 0
        %1534 = vmatpush1.bf16.msra.mxu0 %v1513
        %1535 = vmatprep.subr.bf16.mxu0 0
        %1536 = vmatpush1.bf16.msra.mxu0 %v1514
        %1537 = vmatprep.subr.bf16.mxu0 0
        %1538 = vmatpush1.bf16.msra.mxu0 %v1515
        %1539 = vmatprep.subr.bf16.mxu0 0
        %1540 = vmatpush1.bf16.msra.mxu0 %v1516
        %1541 = vmatprep.subr.bf16.mxu0 0
        %1542 = vmatpush1.bf16.msra.mxu0 0
        %1543 = vmatprep.subr.bf16.mxu0 0
        %1544 = vmatpush1.bf16.msra.mxu0 0
        %1545 = vmatprep.subr.bf16.mxu0 0
        %1546 = vmatpush1.bf16.msra.mxu0 0
        %1547 = vmatprep.subr.bf16.mxu0 0
        %1548 = vmatpush1.bf16.msra.mxu0 0
        %1549 = vmatprep.subr.bf16.mxu0 0
        %1550 = vmatpush1.bf16.msra.mxu0 0
        %1551 = vmatprep.subr.bf16.mxu0 0
        %1552 = vmatpush1.bf16.msra.mxu0 0
        %1553 = vmatprep.subr.bf16.mxu0 0
        %1554 = vmatpush1.bf16.msra.mxu0 0
        %1555 = vmatprep.subr.bf16.mxu0 0
        %1556 = vmatpush1.bf16.msra.mxu0 0
        %1557 = vmatprep.mubr.bf16.mxu0 0
        %1558 = vmatmul.mubr.bf16.gmra.mrb[0].mxu0 %v1446
        %v1559 = vpop.f32.mrb[0].mxu0
        %v1560 = vadd.f32 %v1475, %v1559
        %v1561 = vpop.f32.mrb[0].mxu0
        %v1562 = vpop.f32.mrb[0].mxu0
        %v1563 = vadd.f32 %v1475, %v1562
        %v1564 = vpop.f32.mrb[0].mxu0
        %1565 = vmatprep.mubr.bf16.mxu0 0
        %1566 = vmatmul.mubr.bf16.gmra.mrb[0].mxu0 %v1447
        %v1567 = vpop.f32.mrb[0].mxu0
        %v1568 = vadd.f32 %v1475, %v1567
        %v1569 = vpop.f32.mrb[0].mxu0
        %v1570 = vpop.f32.mrb[0].mxu0
        %v1571 = vadd.f32 %v1475, %v1570
        %v1572 = vpop.f32.mrb[0].mxu0
        %1573 = vmatprep.mubr.bf16.mxu0 0
        %1574 = vmatmul.mubr.bf16.gmra.mrb[0].mxu0 %v1448
        %v1575 = vpop.f32.mrb[0].mxu0
        %v1576 = vadd.f32 %v1475, %v1575
        %v1577 = vpop.f32.mrb[0].mxu0
        %v1578 = vpop.f32.mrb[0].mxu0
        %v1579 = vadd.f32 %v1475, %v1578
        %v1580 = vpop.f32.mrb[0].mxu0
        %1581 = vmatprep.mubr.bf16.mxu0 0
        %1582 = vmatmul.mubr.bf16.gmra.mrb[0].mxu0 %v1449
        %v1583 = vpop.f32.mrb[0].mxu0
        %v1584 = vadd.f32 %v1475, %v1583
        %v1585 = vpop.f32.mrb[0].mxu0
        %v1586 = vpop.f32.mrb[0].mxu0
        %v1587 = vadd.f32 %v1475, %v1586
        %v1588 = vpop.f32.mrb[0].mxu0
        %1589 = vmatprep.mubr.bf16.mxu0 0
        %1590 = vmatmul.mubr.bf16.gmra.mrb[0].mxu0 %v1450
        %v1591 = vpop.f32.mrb[0].mxu0
        %v1592 = vadd.f32 %v1475, %v1591
        %v1593 = vpop.f32.mrb[0].mxu0
        %v1594 = vpop.f32.mrb[0].mxu0
        %v1595 = vadd.f32 %v1475, %v1594
        %v1596 = vpop.f32.mrb[0].mxu0
        %1597 = vmatprep.mubr.bf16.mxu0 0
        %1598 = vmatmul.mubr.bf16.gmra.mrb[0].mxu0 %v1451
        %v1599 = vpop.f32.mrb[0].mxu0
        %v1600 = vadd.f32 %v1475, %v1599
        %v1601 = vpop.f32.mrb[0].mxu0
        %v1602 = vpop.f32.mrb[0].mxu0
        %v1603 = vadd.f32 %v1475, %v1602
        %v1604 = vpop.f32.mrb[0].mxu0
        %1605 = vmatprep.mubr.bf16.mxu0 0
        %1606 = vmatmul.mubr.bf16.gmra.mrb[0].mxu0 %v1452
        %v1607 = vpop.f32.mrb[0].mxu0
        %v1608 = vadd.f32 %v1475, %v1607
        %v1609 = vpop.f32.mrb[0].mxu0
        %v1610 = vpop.f32.mrb[0].mxu0
        %v1611 = vadd.f32 %v1475, %v1610
        %v1612 = vpop.f32.mrb[0].mxu0
        %1613 = vmatprep.mubr.bf16.mxu0 0
        %1614 = vmatmul.mubr.bf16.gmra.mrb[0].mxu0 %v1453
        %v1615 = vpop.f32.mrb[0].mxu0
        %v1616 = vadd.f32 %v1475, %v1615
        %v1617 = vpop.f32.mrb[0].mxu0
        %v1618 = vpop.f32.mrb[0].mxu0
        %v1619 = vadd.f32 %v1475, %v1618
        %v1620 = vpop.f32.mrb[0].mxu0
        %1621 = vdwg.mxu0
        %1622 = vadd.xlane.f32.xlu0 %v1560
        %v1623 = vpop.xlane.xlu0 %1622
        %1624 = vadd.xlane.f32.xlu0 %v1563
        %v1625 = vpop.xlane.xlu0 %1624
        %1626 = vadd.xlane.f32.xlu0 %v1568
        %v1627 = vpop.xlane.xlu0 %1626
        %1628 = vadd.xlane.f32.xlu0 %v1571
        %v1629 = vpop.xlane.xlu0 %1628
        %1630 = vadd.xlane.f32.xlu0 %v1576
        %v1631 = vpop.xlane.xlu0 %1630
        %1632 = vadd.xlane.f32.xlu0 %v1579
        %v1633 = vpop.xlane.xlu0 %1632
        %1634 = vadd.xlane.f32.xlu0 %v1584
        %v1635 = vpop.xlane.xlu0 %1634
        %1636 = vadd.xlane.f32.xlu0 %v1587
        %v1637 = vpop.xlane.xlu0 %1636
        %1638 = vadd.xlane.f32.xlu0 %v1592
        %v1639 = vpop.xlane.xlu0 %1638
        %1640 = vadd.xlane.f32.xlu0 %v1595
        %v1641 = vpop.xlane.xlu0 %1640
        %1642 = vadd.xlane.f32.xlu0 %v1600
        %v1643 = vpop.xlane.xlu0 %1642
        %1644 = vadd.xlane.f32.xlu0 %v1603
        %v1645 = vpop.xlane.xlu0 %1644
        %1646 = vadd.xlane.f32.xlu0 %v1608
        %v1647 = vpop.xlane.xlu0 %1646
        %1648 = vadd.xlane.f32.xlu0 %v1611
        %v1649 = vpop.xlane.xlu0 %1648
        %1650 = vadd.xlane.f32.xlu0 %v1616
        %v1651 = vpop.xlane.xlu0 %1650
        %1652 = vadd.xlane.f32.xlu0 %v1619
        %v1653 = vpop.xlane.xlu0 %1652
        %v1654 = vmul.f32 %v1560, %v1560
        %v1655 = vmul.f32 %v1563, %v1563
        %v1656 = vmul.f32 %v1568, %v1568
        %v1657 = vmul.f32 %v1571, %v1571
        %v1658 = vmul.f32 %v1576, %v1576
        %v1659 = vmul.f32 %v1579, %v1579
        %v1660 = vmul.f32 %v1584, %v1584
        %v1661 = vmul.f32 %v1587, %v1587
        %v1662 = vmul.f32 %v1592, %v1592
        %v1663 = vmul.f32 %v1595, %v1595
        %v1664 = vmul.f32 %v1600, %v1600
        %v1665 = vmul.f32 %v1603, %v1603
        %v1666 = vmul.f32 %v1608, %v1608
        %v1667 = vmul.f32 %v1611, %v1611
        %v1668 = vmul.f32 %v1616, %v1616
        %v1669 = vmul.f32 %v1619, %v1619
        %1670 = vadd.xlane.f32.xlu0 %v1654
        %v1671 = vpop.xlane.xlu0 %1670
        %1672 = vadd.xlane.f32.xlu0 %v1655
        %v1673 = vpop.xlane.xlu0 %1672
        %1674 = vadd.xlane.f32.xlu0 %v1656
        %v1675 = vpop.xlane.xlu0 %1674
        %1676 = vadd.xlane.f32.xlu0 %v1657
        %v1677 = vpop.xlane.xlu0 %1676
        %1678 = vadd.xlane.f32.xlu0 %v1658
        %v1679 = vpop.xlane.xlu0 %1678
        %1680 = vadd.xlane.f32.xlu0 %v1659
        %v1681 = vpop.xlane.xlu0 %1680
        %1682 = vadd.xlane.f32.xlu0 %v1660
        %v1683 = vpop.xlane.xlu0 %1682
        %1684 = vadd.xlane.f32.xlu0 %v1661
        %v1685 = vpop.xlane.xlu0 %1684
        %1686 = vadd.xlane.f32.xlu0 %v1662
        %v1687 = vpop.xlane.xlu0 %1686
        %1688 = vadd.xlane.f32.xlu0 %v1663
        %v1689 = vpop.xlane.xlu0 %1688
        %1690 = vadd.xlane.f32.xlu0 %v1664
        %v1691 = vpop.xlane.xlu0 %1690
        %1692 = vadd.xlane.f32.xlu0 %v1665
        %v1693 = vpop.xlane.xlu0 %1692
        %1694 = vadd.xlane.f32.xlu0 %v1666
        %v1695 = vpop.xlane.xlu0 %1694
        %1696 = vadd.xlane.f32.xlu0 %v1667
        %v1697 = vpop.xlane.xlu0 %1696
        %1698 = vadd.xlane.f32.xlu0 %v1668
        %v1699 = vpop.xlane.xlu0 %1698
        %1700 = vadd.xlane.f32.xlu0 %v1669
        %v1701 = vpop.xlane.xlu0 %1700
        %v1702 = vmul.f32 %v1623, 0.0078125
        %v1703 = vmul.f32 %v1625, 0.0078125
        %v1704 = vmul.f32 %v1627, 0.0078125
        %v1705 = vmul.f32 %v1629, 0.0078125
        %v1706 = vmul.f32 %v1631, 0.0078125
        %v1707 = vmul.f32 %v1633, 0.0078125
        %v1708 = vmul.f32 %v1635, 0.0078125
        %v1709 = vmul.f32 %v1637, 0.0078125
        %v1710 = vmul.f32 %v1639, 0.0078125
        %v1711 = vmul.f32 %v1641, 0.0078125
        %v1712 = vmul.f32 %v1643, 0.0078125
        %v1713 = vmul.f32 %v1645, 0.0078125
        %v1714 = vmul.f32 %v1647, 0.0078125
        %v1715 = vmul.f32 %v1649, 0.0078125
        %v1716 = vmul.f32 %v1651, 0.0078125
        %v1717 = vmul.f32 %v1653, 0.0078125
        %v1718 = vmul.f32 %v1671, 0.0078125
        %v1719 = vmul.f32 %v1673, 0.0078125
        %v1720 = vmul.f32 %v1675, 0.0078125
        %v1721 = vmul.f32 %v1677, 0.0078125
        %v1722 = vmul.f32 %v1679, 0.0078125
        %v1723 = vmul.f32 %v1681, 0.0078125
        %v1724 = vmul.f32 %v1683, 0.0078125
        %v1725 = vmul.f32 %v1685, 0.0078125
        %v1726 = vmul.f32 %v1687, 0.0078125
        %v1727 = vmul.f32 %v1689, 0.0078125
        %v1728 = vmul.f32 %v1691, 0.0078125
        %v1729 = vmul.f32 %v1693, 0.0078125
        %v1730 = vmul.f32 %v1695, 0.0078125
        %v1731 = vmul.f32 %v1697, 0.0078125
        %v1732 = vmul.f32 %v1699, 0.0078125
        %v1733 = vmul.f32 %v1701, 0.0078125
        %v1734 = vmul.f32 %v1702, %v1702
        %v1735 = vmul.f32 %v1703, %v1703
        %v1736 = vmul.f32 %v1704, %v1704
        %v1737 = vmul.f32 %v1705, %v1705
        %v1738 = vmul.f32 %v1706, %v1706
        %v1739 = vmul.f32 %v1707, %v1707
        %v1740 = vmul.f32 %v1708, %v1708
        %v1741 = vmul.f32 %v1709, %v1709
        %v1742 = vmul.f32 %v1710, %v1710
        %v1743 = vmul.f32 %v1711, %v1711
        %v1744 = vmul.f32 %v1712, %v1712
        %v1745 = vmul.f32 %v1713, %v1713
        %v1746 = vmul.f32 %v1714, %v1714
        %v1747 = vmul.f32 %v1715, %v1715
        %v1748 = vmul.f32 %v1716, %v1716
        %v1749 = vmul.f32 %v1717, %v1717
        %v1750 = vsub.f32 %v1718, %v1734
        %v1751 = vsub.f32 %v1719, %v1735
        %v1752 = vsub.f32 %v1720, %v1736
        %v1753 = vsub.f32 %v1721, %v1737
        %v1754 = vsub.f32 %v1722, %v1738
        %v1755 = vsub.f32 %v1723, %v1739
        %v1756 = vsub.f32 %v1724, %v1740
        %v1757 = vsub.f32 %v1725, %v1741
        %v1758 = vsub.f32 %v1726, %v1742
        %v1759 = vsub.f32 %v1727, %v1743
        %v1760 = vsub.f32 %v1728, %v1744
        %v1761 = vsub.f32 %v1729, %v1745
        %v1762 = vsub.f32 %v1730, %v1746
        %v1763 = vsub.f32 %v1731, %v1747
        %v1764 = vsub.f32 %v1732, %v1748
        %v1765 = vsub.f32 %v1733, %v1749
        %v1766 = vmax.f32 %v1750, 0.0
        %v1767 = vmax.f32 %v1751, 0.0
        %v1768 = vmax.f32 %v1752, 0.0
        %v1769 = vmax.f32 %v1753, 0.0
        %v1770 = vmax.f32 %v1754, 0.0
        %v1771 = vmax.f32 %v1755, 0.0
        %v1772 = vmax.f32 %v1756, 0.0
        %v1773 = vmax.f32 %v1757, 0.0
        %v1774 = vmax.f32 %v1758, 0.0
        %v1775 = vmax.f32 %v1759, 0.0
        %v1776 = vmax.f32 %v1760, 0.0
        %v1777 = vmax.f32 %v1761, 0.0
        %v1778 = vmax.f32 %v1762, 0.0
        %v1779 = vmax.f32 %v1763, 0.0
        %v1780 = vmax.f32 %v1764, 0.0
        %v1781 = vmax.f32 %v1765, 0.0
        %v1782 = vsub.f32 %v1560, %v1702
        %v1783 = vsub.f32 %v1563, %v1703
        %v1784 = vsub.f32 %v1568, %v1704
        %v1785 = vsub.f32 %v1571, %v1705
        %v1786 = vsub.f32 %v1576, %v1706
        %v1787 = vsub.f32 %v1579, %v1707
        %v1788 = vsub.f32 %v1584, %v1708
        %v1789 = vsub.f32 %v1587, %v1709
        %v1790 = vsub.f32 %v1592, %v1710
        %v1791 = vsub.f32 %v1595, %v1711
        %v1792 = vsub.f32 %v1600, %v1712
        %v1793 = vsub.f32 %v1603, %v1713
        %v1794 = vsub.f32 %v1608, %v1714
        %v1795 = vsub.f32 %v1611, %v1715
        %v1796 = vsub.f32 %v1616, %v1716
        %v1797 = vsub.f32 %v1619, %v1717
        %v1798 = vadd.f32 %v1766, 1e-05
        %v1799 = vadd.f32 %v1767, 1e-05
        %v1800 = vadd.f32 %v1768, 1e-05
        %v1801 = vadd.f32 %v1769, 1e-05
        %v1802 = vadd.f32 %v1770, 1e-05
        %v1803 = vadd.f32 %v1771, 1e-05
        %v1804 = vadd.f32 %v1772, 1e-05
        %v1805 = vadd.f32 %v1773, 1e-05
        %v1806 = vadd.f32 %v1774, 1e-05
        %v1807 = vadd.f32 %v1775, 1e-05
        %v1808 = vadd.f32 %v1776, 1e-05
        %v1809 = vadd.f32 %v1777, 1e-05
        %v1810 = vadd.f32 %v1778, 1e-05
        %v1811 = vadd.f32 %v1779, 1e-05
        %v1812 = vadd.f32 %v1780, 1e-05
        %v1813 = vadd.f32 %v1781, 1e-05
        %v1814 = vrsqrt.pop %v1798
        %v1815 = vrsqrt.pop %v1799
        %v1816 = vrsqrt.pop %v1800
        %v1817 = vrsqrt.pop %v1801
        %v1818 = vrsqrt.pop %v1802
        %v1819 = vrsqrt.pop %v1803
        %v1820 = vrsqrt.pop %v1804
        %v1821 = vrsqrt.pop %v1805
        %v1822 = vrsqrt.pop %v1806
        %v1823 = vrsqrt.pop %v1807
        %v1824 = vrsqrt.pop %v1808
        %v1825 = vrsqrt.pop %v1809
        %v1826 = vrsqrt.pop %v1810
        %v1827 = vrsqrt.pop %v1811
        %v1828 = vrsqrt.pop %v1812
        %v1829 = vrsqrt.pop %v1813
        %v1830 = vmul.f32 %v1782, %v1814
        %v1831 = vmul.f32 %v1783, %v1815
        %v1832 = vmul.f32 %v1784, %v1816
        %v1833 = vmul.f32 %v1785, %v1817
        %v1834 = vmul.f32 %v1786, %v1818
        %v1835 = vmul.f32 %v1787, %v1819
        %v1836 = vmul.f32 %v1788, %v1820
        %v1837 = vmul.f32 %v1789, %v1821
        %v1838 = vmul.f32 %v1790, %v1822
        %v1839 = vmul.f32 %v1791, %v1823
        %v1840 = vmul.f32 %v1792, %v1824
        %v1841 = vmul.f32 %v1793, %v1825
        %v1842 = vmul.f32 %v1794, %v1826
        %v1843 = vmul.f32 %v1795, %v1827
        %v1844 = vmul.f32 %v1796, %v1828
        %v1845 = vmul.f32 %v1797, %v1829
        %v1846 = vld [vmem:[%s11] sm:$0x1]
        %v1848 = vlaneseq
        %v1849 = vshrl.u32 %v1848, 7
        %v1850 = vsub.s32 0, %v1849
        %v1851 = vrot.slane %v1846, %v1850
        %v1853 = vmul.f32 %v1830, %v1851
        %v1854 = vmul.f32 %v1831, %v1851
        %v1855 = vmul.f32 %v1832, %v1851
        %v1856 = vmul.f32 %v1833, %v1851
        %v1857 = vmul.f32 %v1834, %v1851
        %v1858 = vmul.f32 %v1835, %v1851
        %v1859 = vmul.f32 %v1836, %v1851
        %v1860 = vmul.f32 %v1837, %v1851
        %v1861 = vmul.f32 %v1838, %v1851
        %v1862 = vmul.f32 %v1839, %v1851
        %v1863 = vmul.f32 %v1840, %v1851
        %v1864 = vmul.f32 %v1841, %v1851
        %v1865 = vmul.f32 %v1842, %v1851
        %v1866 = vmul.f32 %v1843, %v1851
        %v1867 = vmul.f32 %v1844, %v1851
        %v1868 = vmul.f32 %v1845, %v1851
        %v1869 = vld [vmem:[%s12] sm:$0x1]
        %v1871 = vlaneseq
        %v1872 = vshrl.u32 %v1871, 7
        %v1873 = vsub.s32 0, %v1872
        %v1874 = vrot.slane %v1869, %v1873
        %v1876 = vadd.f32 %v1853, %v1874
        %v1877 = vadd.f32 %v1854, %v1874
        %v1878 = vadd.f32 %v1855, %v1874
        %v1879 = vadd.f32 %v1856, %v1874
        %v1880 = vadd.f32 %v1857, %v1874
        %v1881 = vadd.f32 %v1858, %v1874
        %v1882 = vadd.f32 %v1859, %v1874
        %v1883 = vadd.f32 %v1860, %v1874
        %v1884 = vadd.f32 %v1861, %v1874
        %v1885 = vadd.f32 %v1862, %v1874
        %v1886 = vadd.f32 %v1863, %v1874
        %v1887 = vadd.f32 %v1864, %v1874
        %v1888 = vadd.f32 %v1865, %v1874
        %v1889 = vadd.f32 %v1866, %v1874
        %v1890 = vadd.f32 %v1867, %v1874
        %v1891 = vadd.f32 %v1868, %v1874
        %1892 = vst [vmem:[%s502] sm:$0xff] %v1876
        %1893 = vst [vmem:[%s502 + $0x8] sm:$0xff] %v1877
        %1894 = vst [vmem:[%s502 + $0x10] sm:$0xff] %v1878
        %1895 = vst [vmem:[%s502 + $0x18] sm:$0xff] %v1879
        %1896 = vst [vmem:[%s502 + $0x20] sm:$0xff] %v1880
        %1897 = vst [vmem:[%s502 + $0x28] sm:$0xff] %v1881
        %1898 = vst [vmem:[%s502 + $0x30] sm:$0xff] %v1882
        %1899 = vst [vmem:[%s502 + $0x38] sm:$0xff] %v1883
        %1900 = vst [vmem:[%s502 + $0x40] sm:$0xff] %v1884
        %1901 = vst [vmem:[%s502 + $0x48] sm:$0xff] %v1885
        %1902 = vst [vmem:[%s502 + $0x50] sm:$0xff] %v1886
        %1903 = vst [vmem:[%s502 + $0x58] sm:$0xff] %v1887
        %1904 = vst [vmem:[%s502 + $0x60] sm:$0xff] %v1888
        %1905 = vst [vmem:[%s502 + $0x68] sm:$0xff] %v1889
        %1906 = vst [vmem:[%s502 + $0x70] sm:$0xff] %v1890
        %1907 = vst [vmem:[%s502 + $0x78] sm:$0xff] %v1891
        %s1908 = sand.u32 %s318, 1
        %s1909 = scalar_lea.sflag [#allocation4], %s1908
        %s1910 = sand.u32 %s318, 1
        %s1911 = smul.addr %s1910, 128
        %s1912 = scalar_lea.vmem [#allocation10], %s1911
        // Predicated region
        $region89: #{tpu_custom_call.1} parent=71 // pred_check
          %p1913 = pneg %p328
        $region90: #{tpu_custom_call.1} parent=71 // pred_check_branch
          %1915 = sbr.rel (%p1913) target = $region92
        $region91: #{tpu_custom_call.1} parent=71 // pred_region
          %s1916 = smul.u32 16, %s32
          %s1918 = ssub.s32 2048, 2048
          %1919 = vsyncadd %s1909, %s1918
          %s1920 = smul.addr %s1916, 128
          %s1921 = scalar_lea.hbm %s13, %s1920
          %s1922 = sshll.u32 %s1912, 4
          %s1923 = int_to_ptr.vmem [resolvable:$true] %s1922
          %1928 = dma.vmem_to_hbm [thread:$0]  %s1923, 2048, %s1921, %s1909, 128, 128, 8
        $region92: #{tpu_custom_call.1} parent=71 // pred_fallthru
          _
      $region72: #{tpu_custom_call.1} parent=5 // pred_fallthru
        _
      %p1929 = scmp.le.s32.totalorder 2, %s27
      // Predicated region
      $region93: #{tpu_custom_call.1} parent=5 // pred_check
        %p1930 = pneg %p1929
      $region94: #{tpu_custom_call.1} parent=5 // pred_check_branch
        %1932 = sbr.rel (%p1930) target = $region96
      $region95: #{tpu_custom_call.1} parent=5 // pred_region
        %s1933 = ssub.s32 %s27, 2
        // Predicated region
        $region97: #{tpu_custom_call.1} parent=95 // pred_check
          %p1934 = pneg %p334
        $region98: #{tpu_custom_call.1} parent=95 // pred_check_branch
          %1936 = sbr.rel (%p1934) target = $region100
        $region99: #{tpu_custom_call.1} parent=95 // pred_region
          %s1937 = sand.u32 %s319, 1
          %s1938 = scalar_lea.sflag [#allocation4], %s1937
          %s1939 = sand.u32 %s319, 1
          %s1940 = smul.addr %s1939, 128
          %s1941 = scalar_lea.vmem [#allocation10], %s1940
          %1942 = dma.done %s1938, 2048
        $region100: #{tpu_custom_call.1} parent=95 // pred_fallthru
          _
      $region96: #{tpu_custom_call.1} parent=5 // pred_fallthru
        _
    $region6: #{tpu_custom_call.1} parent=1 // loop_footer
      %s31 = sadd.s32 1, %s27
    $region7: #{tpu_custom_call.1} parent=1 // loop_footer_branch
      %26 = sbr.rel target = $region3
    $region8: #{tpu_custom_call.1} parent=1 // loop_exit
      _
    %1943 = vsyncpa [#allocation3], 1
    %s1944 = scalar_lea.sflag [#allocation3], 1
    %1945 = vsyncpa %s1944, 1
    %1946 = vsyncpa [#allocation6], 1
    %1947 = vsyncpa [#allocation9], 1
    %1948 = vsyncpa [#allocation4], 1
    %s1949 = scalar_lea.sflag [#allocation4], 1
    %1950 = vsyncpa %s1949, 1

</llo_original>
